<compile_context>
chip_gen: v5e
topology: v5e:2x2
jax: 0.10.0
libtpu: 0.0.40
codegen_flags: <defaults>
</compile_context>

<pallas_src>
import math
from functools import partial

import numpy as np
import jax
import jax.numpy as jnp
from jax import lax
from jax.experimental import pallas as pl
from jax.experimental.pallas import tpu as pltpu

# ----------------------- small deterministic config -----------------------
BLOCK_SIZE = 16
VOCAB = 256
N_LAYER = 2
N_HEAD = 4
N_EMBD = 32
N_EMBD_PROJ = 128
ROTARY_PCT = 0.25
LN_EPS = 1e-5
HEAD = N_EMBD // N_HEAD           # 8
ROT = int(HEAD * ROTARY_PCT)      # 2 rotary dims per head
HALF = ROT // 2                   # 1

# MXU input dtype: f32 for exact reference match at toy size; set to jnp.bfloat16 on
# v6e/v7x when scaling up (accumulation stays f32 via preferred_element_type).
MXU_DTYPE = jnp.float32

# ----------------------- packed-operand layout constants -------------------
QKV_W = 128                                   # fused q|k|v (96) padded to one full vreg width
WC_LANES = QKV_W + N_EMBD_PROJ + N_EMBD       # 288: [wqkv_pad | wfc | wo], lane-aligned slices
VEC_ROWS_PER_LAYER = 8
(VEC_LN1W, VEC_LN1B, VEC_BQKV, VEC_BO,
 VEC_LN2W, VEC_LN2B, VEC_BFC, VEC_BP) = range(VEC_ROWS_PER_LAYER)
VEC_LNFW = N_LAYER * VEC_ROWS_PER_LAYER
VEC_LNFB = VEC_LNFW + 1
VEC_HMASK = VEC_LNFB + 1
VEC_ROWS = VEC_HMASK + N_HEAD                 # 22 rows x 128 lanes


def _mm(a, b):
    return jnp.dot(a.astype(MXU_DTYPE), b.astype(MXU_DTYPE),
                   preferred_element_type=jnp.float32)


def _layernorm(x, w, b, eps):
    mu = jnp.mean(x, axis=-1, keepdims=True)
    var = jnp.mean((x - mu) ** 2, axis=-1, keepdims=True)
    return (x - mu) * lax.rsqrt(var + eps) * w + b


# ------------------------------- kernels ----------------------------------
def fused_forward_kernel(x_ref, tabs_ref, bias_ref, wc_ref, wp_ref, vec_ref,
                         logits_ref, *, n_layer, head_size):
    """Whole forward in one invocation: layers unrolled, x resident in VMEM."""
    x = x_ref[...]                          # (B*T, C) residual stream
    C = x.shape[-1]
    cosT = tabs_ref[0]                      # (B*T, 128)  cos (1 on pass/v/pad cols)
    sinA = tabs_ref[1]                      # (B*T, 128)  -sin on first-half rotary cols
    sinB = tabs_ref[2]                      # (B*T, 128)  +sin on second-half rotary cols
    vec = vec_ref[...]                      # (VEC_ROWS, 128) packed small vectors
    bias = bias_ref[...][None]              # (1, B*T, B*T) block-diag causal bias
    hm = vec[VEC_HMASK:VEC_HMASK + N_HEAD, 0:C]   # (H, C) per-head column masks
    hmb = hm[:, None, :]                    # (H, 1, C)
    scale = 1.0 / math.sqrt(head_size)

    def row(r, n):                          # (1, n) static slice of the vector slab
        return vec[r:r + 1, 0:n]

    for l in range(n_layer):                # static unroll (N_LAYER = 2)
        base = l * VEC_ROWS_PER_LAYER
        ln1w, ln1b = row(base + VEC_LN1W, C), row(base + VEC_LN1B, C)
        bqkv = row(base + VEC_BQKV, QKV_W)
        bo = row(base + VEC_BO, C)
        ln2w, ln2b = row(base + VEC_LN2W, C), row(base + VEC_LN2B, C)
        bfc = row(base + VEC_BFC, N_EMBD_PROJ)
        bp = row(base + VEC_BP, C)
        Wl = wc_ref[l]                      # (C, 288) packed [wqkv_pad | wfc | wo]
        w_qkv = Wl[:, 0:QKV_W]
        w_fc = Wl[:, QKV_W:QKV_W + N_EMBD_PROJ]
        w_o = Wl[:, QKV_W + N_EMBD_PROJ:QKV_W + N_EMBD_PROJ + C]
        w_p = wp_ref[l]                     # (P, C)

        # ---------------- attention branch ----------------
        h = _layernorm(x, ln1w, ln1b, LN_EPS)
        qkv = _mm(h, w_qkv) + bqkv          # (B*T, 128) fused q|k|v|0

        # Partial rotary on the fused slab, off the MXU: rotate_half is two static
        # XLU rolls; the sign and the rotary/pass selection live in the sin tables
        # (sinA/sinB are zero outside their rotary columns, cos is 1 on pass/v cols).
        qkv = (qkv * cosT
               + pltpu.roll(qkv, QKV_W - HALF, axis=1) * sinA
               + pltpu.roll(qkv, HALF, axis=1) * sinB)

        q = qkv[:, 0:C]
        k = qkv[:, C:2 * C]
        v = qkv[:, 2 * C:3 * C]

        # Head separation via column masks on k and v ONLY (q unmasked: head columns
        # are disjoint, so masking one side of the q.k contraction is sufficient).
        kh = k[None] * hmb                  # (H, B*T, C)
        vh = v[None] * hmb                  # (H, B*T, C)
        qb = jnp.broadcast_to(q[None], kh.shape)
        s = jnp.einsum("hic,hjc->hij",
                       qb.astype(MXU_DTYPE), kh.astype(MXU_DTYPE),
                       preferred_element_type=jnp.float32) * scale
        # Block-diagonal fold kept at B=2 (review: accept); rebatch (H*B,T,T) at scale.
        p = jax.nn.softmax(s + bias, axis=-1)
        y = jnp.einsum("hij,hjc->hic",
                       p.astype(MXU_DTYPE), vh.astype(MXU_DTYPE),
                       preferred_element_type=jnp.float32)
        y = jnp.sum(y, axis=0)              # (B*T, C); each head owns its columns
        attn_out = _mm(y, w_o) + bo

        # ---------------- MLP branch (parallel residual) ----------------
        h2 = _layernorm(x, ln2w, ln2b, LN_EPS)
        m = _mm(h2, w_fc) + bfc
        m = 0.5 * m * (1.0 + lax.erf(m / math.sqrt(2.0)))   # exact (erf) GELU, f32
        mlp_out = _mm(m, w_p) + bp

        x = attn_out + mlp_out + x          # residual never leaves VMEM

    # ---------------- final LN + lm_head (lane-dense (B*T, V) store) ----------------
    hN = _layernorm(x, row(VEC_LNFW, C), row(VEC_LNFB, C), LN_EPS)
    w_lm = wc_ref[n_layer][:, 0:VOCAB]
    logits_ref[...] = _mm(hN, w_lm)


def dense_capture_kernel(scale_ref, x_ref, o_ref):
    """DenseCapture.forward: one lane-dense VPU multiply by a precomputed SMEM scalar."""
    o_ref[...] = x_ref[...] * scale_ref[0, 0]


# ------------------------------- wrappers ----------------------------------
def gpt_forward(idx, params, packed, tabs, bias):
    """idx: (B, T) int32 -> logits (B, T, V)."""
    B, T = idx.shape
    # TODO(synk): fold the embedding gather into the kernel (PrefetchScalarGridSpec +
    # pl.Element row gather on wte) once B*T is large enough for the extra HBM
    # round-trip of x to matter.
    x = jnp.take(params["wte"], idx, axis=0)          # (B, T, C)
    x2d = x.reshape(B * T, N_EMBD)                    # batch folded onto sublanes

    vmem = pl.BlockSpec(memory_space=pltpu.MemorySpace.VMEM)
    kern = partial(fused_forward_kernel, n_layer=N_LAYER, head_size=HEAD)
    logits2d = pl.pallas_call(
        kern,
        # Grid-less: one invocation, every operand a whole-array VMEM block
        # (~170 KiB total -> far under the scoped-VMEM limit on v5e/v6e/v7x).
        # At scale: tile V / query rows in (8,128) multiples, add a "parallel"
        # grid axis for v7x's 2 TensorCores, and set vmem_limit_bytes explicitly.
        out_shape=jax.ShapeDtypeStruct((B * T, VOCAB), jnp.float32),
        in_specs=[vmem] * 6,
        out_specs=vmem,
        cost_estimate=pl.CostEstimate(flops=1_400_000, transcendentals=6_200,
                                      bytes_accessed=200_000),
    )(x2d, tabs, bias, packed["wC"], packed["wp"], packed["vec"])

    # TODO(synk): targets/cross-entropy loss path not exercised (targets=None), and the
    # dense capture/inject hook inside the forward (dense=None path) is not threaded here.
    return logits2d.reshape(B, T, VOCAB)


def dense_capture(capture_weights, activations, layer_num):
    """Pallas DenseCapture.forward (layer_num is a static int).

    softmax over the tiny (n_layer,) parameter + static index is done in the wrapper
    (per perf review); the kernel is the actual data-touching multiply.
    """
    B, T, C = activations.shape
    x2d = activations.reshape(B, T * C)               # lane-dense view (last dim = 256)
    scale = jax.nn.softmax(capture_weights, axis=0)[layer_num].reshape(1, 1)
    out = pl.pallas_call(
        dense_capture_kernel,
        out_shape=jax.ShapeDtypeStruct(x2d.shape, activations.dtype),
        in_specs=[pl.BlockSpec(memory_space=pltpu.MemorySpace.SMEM),
                  pl.BlockSpec(memory_space=pltpu.MemorySpace.VMEM)],
        out_specs=pl.BlockSpec(memory_space=pltpu.MemorySpace.VMEM),
    )(scale.astype(jnp.float32), x2d)
    return out.reshape(B, T, C)


# ------------------------- parameter construction --------------------------
def init_params(key):
    ks = iter(jax.random.split(key, 32))
    norm = lambda shape, std: std * jax.random.normal(next(ks), shape, jnp.float32)

    params = {"wte": norm((VOCAB, N_EMBD), 0.02)}
    proj_std = 0.02 / math.sqrt(2 * N_LAYER)          # special c_proj init

    # QKV column permutation: torch views (..., n_head, 3*head) and splits, so the
    # fused columns are per-head [q|k|v]; regroup to [Q|K|V] (heads contiguous).
    q_idx = [h * 3 * HEAD + i for h in range(N_HEAD) for i in range(HEAD)]
    k_idx = [h * 3 * HEAD + HEAD + i for h in range(N_HEAD) for i in range(HEAD)]
    v_idx = [h * 3 * HEAD + 2 * HEAD + i for h in range(N_HEAD) for i in range(HEAD)]
    perm = jnp.array(q_idx + k_idx + v_idx, dtype=jnp.int32)

    layers = []
    for _ in range(N_LAYER):
        w_attn = norm((3 * N_EMBD, N_EMBD), 0.02)
        b_attn = norm((3 * N_EMBD,), 0.02)
        w_o = norm((N_EMBD, N_EMBD), proj_std)
        w_fc = norm((N_EMBD_PROJ, N_EMBD), 0.02)
        w_p = norm((N_EMBD, N_EMBD_PROJ), proj_std)
        layers.append(dict(
            ln1w=jnp.ones((N_EMBD,), jnp.float32),
            ln1b=jnp.zeros((N_EMBD,), jnp.float32),
            wqkv=w_attn.T[:, perm],                       # (C, 3C)
            bqkv=b_attn[perm],                            # (3C,)
            wo=w_o.T, bo=norm((N_EMBD,), 0.02),
            ln2w=jnp.ones((N_EMBD,), jnp.float32),
            ln2b=jnp.zeros((N_EMBD,), jnp.float32),
            wfc=w_fc.T, bfc=norm((N_EMBD_PROJ,), 0.02),   # (C, P)
            wp=w_p.T, bp=norm((N_EMBD,), 0.02),           # (P, C)
        ))
    for name in layers[0]:
        params[name] = jnp.stack([lp[name] for lp in layers], axis=0)

    params["lnfw"] = jnp.ones((N_EMBD,), jnp.float32)
    params["lnfb"] = jnp.zeros((N_EMBD,), jnp.float32)
    params["wlm"] = norm((VOCAB, N_EMBD), 0.02).T         # (C, V)

    # DenseCapture parameter.  Exact torch init is arange(n_layer)/(n_layer//6).
    # TODO(synk): n_layer // 6 == 0 for this toy 2-layer config; guard the denominator
    # to keep the weights finite (a literal torch port would produce inf/nan).
    denom = max(N_LAYER // 6, 1)
    params["capture_weights"] = jnp.arange(N_LAYER, dtype=jnp.float32) / denom
    return params


def pack_params(params):
    """Pack the 21 small per-layer operands into 3 slabs (cuts kernel DMA count)."""
    f = lambda a: np.asarray(a, np.float32)
    wC = np.zeros((N_LAYER + 1, N_EMBD, WC_LANES), np.float32)
    wp = np.zeros((N_LAYER, N_EMBD_PROJ, N_EMBD), np.float32)
    vec = np.zeros((VEC_ROWS, QKV_W), np.float32)
    for l in range(N_LAYER):
        wC[l, :, 0:3 * N_EMBD] = f(params["wqkv"][l])              # cols [0,128): wqkv (padded)
        wC[l, :, QKV_W:QKV_W + N_EMBD_PROJ] = f(params["wfc"][l])  # cols [128,256): wfc
        wC[l, :, QKV_W + N_EMBD_PROJ:] = f(params["wo"][l])        # cols [256,288): wo
        wp[l] = f(params["wp"][l])
        b = l * VEC_ROWS_PER_LAYER
        vec[b + VEC_LN1W, :N_EMBD] = f(params["ln1w"][l])
        vec[b + VEC_LN1B, :N_EMBD] = f(params["ln1b"][l])
        vec[b + VEC_BQKV, :3 * N_EMBD] = f(params["bqkv"][l])
        vec[b + VEC_BO, :N_EMBD] = f(params["bo"][l])
        vec[b + VEC_LN2W, :N_EMBD] = f(params["ln2w"][l])
        vec[b + VEC_LN2B, :N_EMBD] = f(params["ln2b"][l])
        vec[b + VEC_BFC, :N_EMBD_PROJ] = f(params["bfc"][l])
        vec[b + VEC_BP, :N_EMBD] = f(params["bp"][l])
    wC[N_LAYER, :, 0:VOCAB] = f(params["wlm"])
    vec[VEC_LNFW, :N_EMBD] = f(params["lnfw"])
    vec[VEC_LNFB, :N_EMBD] = f(params["lnfb"])
    for h in range(N_HEAD):
        vec[VEC_HMASK + h, h * HEAD:(h + 1) * HEAD] = 1.0          # per-head column masks
    return dict(wC=jnp.asarray(wC), wp=jnp.asarray(wp), vec=jnp.asarray(vec))


def build_tables(B, T):
    """Precompute (hoist) every kernel-invariant table once, outside the kernel."""
    t = np.arange(T, dtype=np.float32)
    inv_freq = 1.0 / (10000.0 ** (np.arange(0, ROT, 2, dtype=np.float32) / ROT))  # (HALF,)
    freqs = t[:, None] * inv_freq[None, :]
    emb = np.concatenate([freqs, freqs], axis=-1)                  # (T, ROT)
    sin_ref, cos_ref = np.sin(emb), np.cos(emb)                    # for the pure-JAX reference

    # Rotary tables over the fused, 128-lane qkv slab.  cos is 1 on pass-through /
    # v / pad columns; sinA carries -sin on first-half rotary cols, sinB carries +sin
    # on second-half rotary cols (sign folded in => no in-kernel select needed).
    cosT = np.ones((T, QKV_W), np.float32)
    sinA = np.zeros((T, QKV_W), np.float32)
    sinB = np.zeros((T, QKV_W), np.float32)
    for blk in (0, N_EMBD):                                        # q columns, then k columns
        for h in range(N_HEAD):
            for d in range(ROT):
                c = blk + h * HEAD + d
                ang = t * inv_freq[d if d < HALF else d - HALF]
                cosT[:, c] = np.cos(ang)
                if d < HALF:
                    sinA[:, c] = -np.sin(ang)
                else:
                    sinB[:, c] = np.sin(ang)
    tabs = np.stack([np.tile(cosT, (B, 1)),
                     np.tile(sinA, (B, 1)),
                     np.tile(sinB, (B, 1))], axis=0)               # (3, B*T, 128)

    # Block-diagonal causal additive bias over the folded (B*T) rows.
    r = np.arange(B * T)
    same_batch = (r[:, None] // T) == (r[None, :] // T)
    causal = (r[:, None] % T) >= (r[None, :] % T)
    bias = np.where(same_batch & causal, 0.0, -1e30).astype(np.float32)

    return (jnp.asarray(sin_ref), jnp.asarray(cos_ref),
            jnp.asarray(tabs), jnp.asarray(bias))


# ----------------------------- pure-JAX reference ---------------------------
def ref_forward(idx, params, sin, cos):
    def ln(x, w, b):
        mu = x.mean(-1, keepdims=True)
        var = ((x - mu) ** 2).mean(-1, keepdims=True)
        return (x - mu) / jnp.sqrt(var + LN_EPS) * w + b

    x = jnp.take(params["wte"], idx, axis=0)
    B, T, C = x.shape
    causal = jnp.tril(jnp.ones((T, T), bool))
    for l in range(N_LAYER):
        h = ln(x, params["ln1w"][l], params["ln1b"][l])
        qkv = h @ params["wqkv"][l] + params["bqkv"][l]
        q, k, v = qkv[..., :C], qkv[..., C:2 * C], qkv[..., 2 * C:]
        ys = []
        for hh in range(N_HEAD):
            s0 = hh * HEAD
            qh, kh, vh = q[..., s0:s0 + HEAD], k[..., s0:s0 + HEAD], v[..., s0:s0 + HEAD]

            def rot(t):
                tr, tp = t[..., :ROT], t[..., ROT:]
                rh = jnp.concatenate([-tr[..., ROT // 2:], tr[..., :ROT // 2]], -1)
                return jnp.concatenate([tr * cos + rh * sin, tp], -1)

            qh, kh = rot(qh), rot(kh)
            att = jnp.einsum("btd,bsd->bts", qh, kh) / math.sqrt(HEAD)
            att = jnp.where(causal, att, -1e30)
            att = jax.nn.softmax(att, -1)
            ys.append(jnp.einsum("bts,bsd->btd", att, vh))
        y = jnp.concatenate(ys, -1)
        attn_out = y @ params["wo"][l] + params["bo"][l]
        h2 = ln(x, params["ln2w"][l], params["ln2b"][l])
        m = h2 @ params["wfc"][l] + params["bfc"][l]
        m = 0.5 * m * (1.0 + lax.erf(m / math.sqrt(2.0)))
        mlp_out = m @ params["wp"][l] + params["bp"][l]
        x = attn_out + mlp_out + x
    return ln(x, params["lnfw"], params["lnfb"]) @ params["wlm"]


# ------------------------------------ main -----------------------------------
if __name__ == "__main__":
    key = jax.random.PRNGKey(0)
    k_param, k_idx = jax.random.split(key)

    params = init_params(k_param)
    packed = pack_params(params)

    B, T = 2, 8
    idx = jax.random.randint(k_idx, (B, T), 0, VOCAB, dtype=jnp.int32)

    sin, cos, tabs, bias = build_tables(B, T)

    # Fused GPT forward: one Pallas kernel for everything after the embedding gather.
    logits = gpt_forward(idx, params, packed, tabs, bias)
    logits = jax.block_until_ready(logits)
    assert logits.shape == (B, T, VOCAB)

    ref_logits = ref_forward(idx, params, sin, cos)
    err = float(jnp.max(jnp.abs(logits - ref_logits)))
    assert err < 2e-3, f"GPT forward mismatch vs reference: {err}"

    # DenseCapture (the spec module): softmax(capture_weights)[layer_num] * activations
    layer_num = 1
    acts = jnp.take(params["wte"], idx, axis=0)             # example activations (B, T, C)
    cap = jax.block_until_ready(
        dense_capture(params["capture_weights"], acts, layer_num))
    cap_ref = jax.nn.softmax(params["capture_weights"], axis=0)[layer_num] * acts
    assert cap.shape == acts.shape
    assert float(jnp.max(jnp.abs(cap - cap_ref))) < 1e-5, "DenseCapture mismatch vs reference"

    print("KERNEL_OK")
</pallas_src>

<mosaic_0001>
module attributes {stable_mosaic.version = 11 : i64} {
  func.func @fused_forward_kernel(%arg0: memref<16x32xf32, #tpu.memory_space<vmem>>, %arg1: memref<3x16x128xf32, #tpu.memory_space<vmem>>, %arg2: memref<16x16xf32, #tpu.memory_space<vmem>>, %arg3: memref<3x32x288xf32, #tpu.memory_space<vmem>>, %arg4: memref<2x128x32xf32, #tpu.memory_space<vmem>>, %arg5: memref<22x128xf32, #tpu.memory_space<vmem>>, %arg6: memref<16x256xf32, #tpu.memory_space<vmem>>) attributes {dimension_semantics = [], scalar_prefetch = 0 : i64, scratch_operands = 0 : i64, tpu.core_type = #tpu.core_type<tc>} {
    %c0 = arith.constant 0 : index
    %c0_0 = arith.constant 0 : index
    %0 = vector.load %arg0[%c0, %c0_0] : memref<16x32xf32, #tpu.memory_space<vmem>>, vector<16x32xf32>
    %c0_1 = arith.constant 0 : index
    %c0_2 = arith.constant 0 : index
    %c0_3 = arith.constant 0 : index
    %1 = vector.load %arg1[%c0_1, %c0_2, %c0_3] : memref<3x16x128xf32, #tpu.memory_space<vmem>>, vector<1x16x128xf32>
    %2 = vector.shape_cast %1 : vector<1x16x128xf32> to vector<16x128xf32>
    %c1 = arith.constant 1 : index
    %c0_4 = arith.constant 0 : index
    %c0_5 = arith.constant 0 : index
    %3 = vector.load %arg1[%c1, %c0_4, %c0_5] : memref<3x16x128xf32, #tpu.memory_space<vmem>>, vector<1x16x128xf32>
    %4 = vector.shape_cast %3 : vector<1x16x128xf32> to vector<16x128xf32>
    %c2 = arith.constant 2 : index
    %c0_6 = arith.constant 0 : index
    %c0_7 = arith.constant 0 : index
    %5 = vector.load %arg1[%c2, %c0_6, %c0_7] : memref<3x16x128xf32, #tpu.memory_space<vmem>>, vector<1x16x128xf32>
    %6 = vector.shape_cast %5 : vector<1x16x128xf32> to vector<16x128xf32>
    %c0_8 = arith.constant 0 : index
    %c0_9 = arith.constant 0 : index
    %7 = vector.load %arg5[%c0_8, %c0_9] : memref<22x128xf32, #tpu.memory_space<vmem>>, vector<22x128xf32>
    %c0_10 = arith.constant 0 : index
    %c0_11 = arith.constant 0 : index
    %8 = vector.load %arg2[%c0_10, %c0_11] : memref<16x16xf32, #tpu.memory_space<vmem>>, vector<16x16xf32>
    %9 = vector.shape_cast %8 : vector<16x16xf32> to vector<1x16x16xf32>
    %10 = vector.extract_strided_slice %7 {offsets = [18, 0], sizes = [4, 32], strides = [1, 1]} : vector<22x128xf32> to vector<4x32xf32>
    %11 = vector.shape_cast %10 : vector<4x32xf32> to vector<4x1x32xf32>
    %12 = vector.extract_strided_slice %7 {offsets = [0, 0], sizes = [1, 32], strides = [1, 1]} : vector<22x128xf32> to vector<1x32xf32>
    %13 = vector.extract_strided_slice %7 {offsets = [1, 0], sizes = [1, 32], strides = [1, 1]} : vector<22x128xf32> to vector<1x32xf32>
    %14 = vector.extract_strided_slice %7 {offsets = [2, 0], sizes = [1, 128], strides = [1, 1]} : vector<22x128xf32> to vector<1x128xf32>
    %15 = vector.extract_strided_slice %7 {offsets = [3, 0], sizes = [1, 32], strides = [1, 1]} : vector<22x128xf32> to vector<1x32xf32>
    %16 = vector.extract_strided_slice %7 {offsets = [4, 0], sizes = [1, 32], strides = [1, 1]} : vector<22x128xf32> to vector<1x32xf32>
    %17 = vector.extract_strided_slice %7 {offsets = [5, 0], sizes = [1, 32], strides = [1, 1]} : vector<22x128xf32> to vector<1x32xf32>
    %18 = vector.extract_strided_slice %7 {offsets = [6, 0], sizes = [1, 128], strides = [1, 1]} : vector<22x128xf32> to vector<1x128xf32>
    %19 = vector.extract_strided_slice %7 {offsets = [7, 0], sizes = [1, 32], strides = [1, 1]} : vector<22x128xf32> to vector<1x32xf32>
    %c0_12 = arith.constant 0 : index
    %c0_13 = arith.constant 0 : index
    %c0_14 = arith.constant 0 : index
    %20 = vector.load %arg3[%c0_12, %c0_13, %c0_14] : memref<3x32x288xf32, #tpu.memory_space<vmem>>, vector<1x32x288xf32>
    %21 = vector.shape_cast %20 : vector<1x32x288xf32> to vector<32x288xf32>
    %22 = vector.extract_strided_slice %21 {offsets = [0, 0], sizes = [32, 128], strides = [1, 1]} : vector<32x288xf32> to vector<32x128xf32>
    %23 = vector.extract_strided_slice %21 {offsets = [0, 128], sizes = [32, 128], strides = [1, 1]} : vector<32x288xf32> to vector<32x128xf32>
    %24 = vector.extract_strided_slice %21 {offsets = [0, 256], sizes = [32, 32], strides = [1, 1]} : vector<32x288xf32> to vector<32x32xf32>
    %c0_15 = arith.constant 0 : index
    %c0_16 = arith.constant 0 : index
    %c0_17 = arith.constant 0 : index
    %25 = vector.load %arg4[%c0_15, %c0_16, %c0_17] : memref<2x128x32xf32, #tpu.memory_space<vmem>>, vector<1x128x32xf32>
    %26 = vector.shape_cast %25 : vector<1x128x32xf32> to vector<128x32xf32>
    %cst = arith.constant dense<0.000000e+00> : vector<16xf32>
    %27 = vector.multi_reduction <add>, %0, %cst [1] : vector<16x32xf32> to vector<16xf32>
    %28 = vector.shape_cast %27 : vector<16xf32> to vector<16x1xf32>
    %cst_18 = arith.constant 3.200000e+01 : f32
    %29 = vector.broadcast %cst_18 : f32 to vector<16x1xf32>
    %30 = arith.divf %28, %29 : vector<16x1xf32>
    %31 = vector.broadcast %30 : vector<16x1xf32> to vector<16x32xf32>
    %32 = arith.subf %0, %31 : vector<16x32xf32>
    %33 = arith.mulf %32, %32 : vector<16x32xf32>
    %cst_19 = arith.constant dense<0.000000e+00> : vector<16xf32>
    %34 = vector.multi_reduction <add>, %33, %cst_19 [1] : vector<16x32xf32> to vector<16xf32>
    %35 = vector.shape_cast %34 : vector<16xf32> to vector<16x1xf32>
    %cst_20 = arith.constant 3.200000e+01 : f32
    %36 = vector.broadcast %cst_20 : f32 to vector<16x1xf32>
    %37 = arith.divf %35, %36 : vector<16x1xf32>
    %38 = vector.broadcast %30 : vector<16x1xf32> to vector<16x32xf32>
    %39 = arith.subf %0, %38 : vector<16x32xf32>
    %cst_21 = arith.constant 9.99999974E-6 : f32
    %40 = vector.broadcast %cst_21 : f32 to vector<16x1xf32>
    %41 = arith.addf %37, %40 : vector<16x1xf32>
    %42 = math.rsqrt %41 : vector<16x1xf32>
    %43 = vector.broadcast %42 : vector<16x1xf32> to vector<16x32xf32>
    %44 = arith.mulf %39, %43 : vector<16x32xf32>
    %45 = vector.broadcast %12 : vector<1x32xf32> to vector<16x32xf32>
    %46 = arith.mulf %44, %45 : vector<16x32xf32>
    %47 = vector.broadcast %13 : vector<1x32xf32> to vector<16x32xf32>
    %48 = arith.addf %46, %47 : vector<16x32xf32>
    %cst_22 = arith.constant dense<0.000000e+00> : vector<16x128xf32>
    %49 = tpu.matmul %48, %22, %cst_22 {dimension_numbers = #tpu.dot_dimension_numbers<[1], [0], [0], [1], [0, 0, 1, 1], [], []>} : vector<16x32xf32>, vector<32x128xf32>, vector<16x128xf32> -> vector<16x128xf32>
    %50 = vector.broadcast %14 : vector<1x128xf32> to vector<16x128xf32>
    %51 = arith.addf %49, %50 : vector<16x128xf32>
    %52 = arith.mulf %51, %2 : vector<16x128xf32>
    %c127_i32 = arith.constant 127 : i32
    %53 = tpu.dynamic_rotate %51 by %c127_i32 dim 1 : vector<16x128xf32>, i32 -> vector<16x128xf32>
    %54 = arith.mulf %53, %4 : vector<16x128xf32>
    %55 = arith.addf %52, %54 : vector<16x128xf32>
    %c1_i32 = arith.constant 1 : i32
    %56 = tpu.dynamic_rotate %51 by %c1_i32 dim 1 : vector<16x128xf32>, i32 -> vector<16x128xf32>
    %57 = arith.mulf %56, %6 : vector<16x128xf32>
    %58 = arith.addf %55, %57 : vector<16x128xf32>
    %59 = vector.extract_strided_slice %58 {offsets = [0, 0], sizes = [16, 32], strides = [1, 1]} : vector<16x128xf32> to vector<16x32xf32>
    %60 = vector.extract_strided_slice %58 {offsets = [0, 32], sizes = [16, 32], strides = [1, 1]} : vector<16x128xf32> to vector<16x32xf32>
    %61 = vector.extract_strided_slice %58 {offsets = [0, 64], sizes = [16, 32], strides = [1, 1]} : vector<16x128xf32> to vector<16x32xf32>
    %62 = vector.shape_cast %60 : vector<16x32xf32> to vector<1x16x32xf32>
    %63 = vector.broadcast %62 : vector<1x16x32xf32> to vector<4x16x32xf32>
    %64 = vector.broadcast %11 : vector<4x1x32xf32> to vector<4x16x32xf32>
    %65 = arith.mulf %63, %64 : vector<4x16x32xf32>
    %66 = vector.shape_cast %61 : vector<16x32xf32> to vector<1x16x32xf32>
    %67 = vector.broadcast %66 : vector<1x16x32xf32> to vector<4x16x32xf32>
    %68 = vector.broadcast %11 : vector<4x1x32xf32> to vector<4x16x32xf32>
    %69 = arith.mulf %67, %68 : vector<4x16x32xf32>
    %70 = vector.shape_cast %59 : vector<16x32xf32> to vector<1x16x32xf32>
    %71 = vector.shape_cast %70 : vector<1x16x32xf32> to vector<1x16x32xf32>
    %72 = vector.broadcast %71 : vector<1x16x32xf32> to vector<4x16x32xf32>
    "tpu.trace_start"() <{level = 10 : i32, message = "hic,hjc->hij"}> : () -> ()
    %cst_23 = arith.constant dense<0.000000e+00> : vector<4x16x16xf32>
    %73 = tpu.matmul %72, %65, %cst_23 {dimension_numbers = #tpu.dot_dimension_numbers<[2], [2], [1], [1], [0, 0, 0, 1, 1, 1], [0], [0]>} : vector<4x16x32xf32>, vector<4x16x32xf32>, vector<4x16x16xf32> -> vector<4x16x16xf32>
    "tpu.trace_stop"() : () -> ()
    %cst_24 = arith.constant 0.353553385 : f32
    %74 = vector.broadcast %cst_24 : f32 to vector<4x16x16xf32>
    %75 = arith.mulf %73, %74 : vector<4x16x16xf32>
    %76 = vector.broadcast %9 : vector<1x16x16xf32> to vector<4x16x16xf32>
    %77 = arith.addf %75, %76 : vector<4x16x16xf32>
    %cst_25 = arith.constant dense<0xFF800000> : vector<4x16xf32>
    %78 = vector.multi_reduction <maximumf>, %77, %cst_25 [2] : vector<4x16x16xf32> to vector<4x16xf32>
    %cst_26 = arith.constant 0xFF800000 : f32
    %79 = vector.broadcast %cst_26 : f32 to vector<4x16xf32>
    %80 = arith.maximumf %79, %78 : vector<4x16xf32>
    %81 = vector.shape_cast %80 : vector<4x16xf32> to vector<4x16x1xf32>
    %82 = vector.broadcast %81 : vector<4x16x1xf32> to vector<4x16x16xf32>
    %83 = arith.subf %77, %82 : vector<4x16x16xf32>
    %84 = math.exp %83 : vector<4x16x16xf32>
    %cst_27 = arith.constant dense<0.000000e+00> : vector<4x16xf32>
    %85 = vector.multi_reduction <add>, %84, %cst_27 [2] : vector<4x16x16xf32> to vector<4x16xf32>
    %86 = vector.shape_cast %85 : vector<4x16xf32> to vector<4x16x1xf32>
    %87 = vector.broadcast %86 : vector<4x16x1xf32> to vector<4x16x16xf32>
    %88 = arith.divf %84, %87 : vector<4x16x16xf32>
    "tpu.trace_start"() <{level = 10 : i32, message = "hij,hjc->hic"}> : () -> ()
    %cst_28 = arith.constant dense<0.000000e+00> : vector<4x16x32xf32>
    %89 = tpu.matmul %88, %69, %cst_28 {dimension_numbers = #tpu.dot_dimension_numbers<[2], [1], [1], [2], [0, 0, 0, 1, 1, 2], [0], [0]>} : vector<4x16x16xf32>, vector<4x16x32xf32>, vector<4x16x32xf32> -> vector<4x16x32xf32>
    "tpu.trace_stop"() : () -> ()
    %cst_29 = arith.constant dense<0.000000e+00> : vector<16x32xf32>
    %90 = vector.multi_reduction <add>, %89, %cst_29 [0] : vector<4x16x32xf32> to vector<16x32xf32>
    %cst_30 = arith.constant dense<0.000000e+00> : vector<16x32xf32>
    %91 = tpu.matmul %90, %24, %cst_30 {dimension_numbers = #tpu.dot_dimension_numbers<[1], [0], [0], [1], [0, 0, 1, 1], [], []>} : vector<16x32xf32>, vector<32x32xf32>, vector<16x32xf32> -> vector<16x32xf32>
    %92 = vector.broadcast %15 : vector<1x32xf32> to vector<16x32xf32>
    %93 = arith.addf %91, %92 : vector<16x32xf32>
    %cst_31 = arith.constant dense<0.000000e+00> : vector<16xf32>
    %94 = vector.multi_reduction <add>, %0, %cst_31 [1] : vector<16x32xf32> to vector<16xf32>
    %95 = vector.shape_cast %94 : vector<16xf32> to vector<16x1xf32>
    %cst_32 = arith.constant 3.200000e+01 : f32
    %96 = vector.broadcast %cst_32 : f32 to vector<16x1xf32>
    %97 = arith.divf %95, %96 : vector<16x1xf32>
    %98 = vector.broadcast %97 : vector<16x1xf32> to vector<16x32xf32>
    %99 = arith.subf %0, %98 : vector<16x32xf32>
    %100 = arith.mulf %99, %99 : vector<16x32xf32>
    %cst_33 = arith.constant dense<0.000000e+00> : vector<16xf32>
    %101 = vector.multi_reduction <add>, %100, %cst_33 [1] : vector<16x32xf32> to vector<16xf32>
    %102 = vector.shape_cast %101 : vector<16xf32> to vector<16x1xf32>
    %cst_34 = arith.constant 3.200000e+01 : f32
    %103 = vector.broadcast %cst_34 : f32 to vector<16x1xf32>
    %104 = arith.divf %102, %103 : vector<16x1xf32>
    %105 = vector.broadcast %97 : vector<16x1xf32> to vector<16x32xf32>
    %106 = arith.subf %0, %105 : vector<16x32xf32>
    %cst_35 = arith.constant 9.99999974E-6 : f32
    %107 = vector.broadcast %cst_35 : f32 to vector<16x1xf32>
    %108 = arith.addf %104, %107 : vector<16x1xf32>
    %109 = math.rsqrt %108 : vector<16x1xf32>
    %110 = vector.broadcast %109 : vector<16x1xf32> to vector<16x32xf32>
    %111 = arith.mulf %106, %110 : vector<16x32xf32>
    %112 = vector.broadcast %16 : vector<1x32xf32> to vector<16x32xf32>
    %113 = arith.mulf %111, %112 : vector<16x32xf32>
    %114 = vector.broadcast %17 : vector<1x32xf32> to vector<16x32xf32>
    %115 = arith.addf %113, %114 : vector<16x32xf32>
    %cst_36 = arith.constant dense<0.000000e+00> : vector<16x128xf32>
    %116 = tpu.matmul %115, %23, %cst_36 {dimension_numbers = #tpu.dot_dimension_numbers<[1], [0], [0], [1], [0, 0, 1, 1], [], []>} : vector<16x32xf32>, vector<32x128xf32>, vector<16x128xf32> -> vector<16x128xf32>
    %117 = vector.broadcast %18 : vector<1x128xf32> to vector<16x128xf32>
    %118 = arith.addf %116, %117 : vector<16x128xf32>
    %cst_37 = arith.constant 5.000000e-01 : f32
    %119 = vector.broadcast %cst_37 : f32 to vector<16x128xf32>
    %120 = arith.mulf %119, %118 : vector<16x128xf32>
    %cst_38 = arith.constant 1.41421354 : f32
    %121 = vector.broadcast %cst_38 : f32 to vector<16x128xf32>
    %122 = arith.divf %118, %121 : vector<16x128xf32>
    %123 = math.erf %122 : vector<16x128xf32>
    %cst_39 = arith.constant 1.000000e+00 : f32
    %124 = vector.broadcast %cst_39 : f32 to vector<16x128xf32>
    %125 = arith.addf %124, %123 : vector<16x128xf32>
    %126 = arith.mulf %120, %125 : vector<16x128xf32>
    %cst_40 = arith.constant dense<0.000000e+00> : vector<16x32xf32>
    %127 = tpu.matmul %126, %26, %cst_40 {dimension_numbers = #tpu.dot_dimension_numbers<[1], [0], [0], [1], [0, 0, 1, 1], [], []>} : vector<16x128xf32>, vector<128x32xf32>, vector<16x32xf32> -> vector<16x32xf32>
    %128 = vector.broadcast %19 : vector<1x32xf32> to vector<16x32xf32>
    %129 = arith.addf %127, %128 : vector<16x32xf32>
    %130 = arith.addf %93, %129 : vector<16x32xf32>
    %131 = arith.addf %130, %0 : vector<16x32xf32>
    %132 = vector.extract_strided_slice %7 {offsets = [8, 0], sizes = [1, 32], strides = [1, 1]} : vector<22x128xf32> to vector<1x32xf32>
    %133 = vector.extract_strided_slice %7 {offsets = [9, 0], sizes = [1, 32], strides = [1, 1]} : vector<22x128xf32> to vector<1x32xf32>
    %134 = vector.extract_strided_slice %7 {offsets = [10, 0], sizes = [1, 128], strides = [1, 1]} : vector<22x128xf32> to vector<1x128xf32>
    %135 = vector.extract_strided_slice %7 {offsets = [11, 0], sizes = [1, 32], strides = [1, 1]} : vector<22x128xf32> to vector<1x32xf32>
    %136 = vector.extract_strided_slice %7 {offsets = [12, 0], sizes = [1, 32], strides = [1, 1]} : vector<22x128xf32> to vector<1x32xf32>
    %137 = vector.extract_strided_slice %7 {offsets = [13, 0], sizes = [1, 32], strides = [1, 1]} : vector<22x128xf32> to vector<1x32xf32>
    %138 = vector.extract_strided_slice %7 {offsets = [14, 0], sizes = [1, 128], strides = [1, 1]} : vector<22x128xf32> to vector<1x128xf32>
    %139 = vector.extract_strided_slice %7 {offsets = [15, 0], sizes = [1, 32], strides = [1, 1]} : vector<22x128xf32> to vector<1x32xf32>
    %c1_41 = arith.constant 1 : index
    %c0_42 = arith.constant 0 : index
    %c0_43 = arith.constant 0 : index
    %140 = vector.load %arg3[%c1_41, %c0_42, %c0_43] : memref<3x32x288xf32, #tpu.memory_space<vmem>>, vector<1x32x288xf32>
    %141 = vector.shape_cast %140 : vector<1x32x288xf32> to vector<32x288xf32>
    %142 = vector.extract_strided_slice %141 {offsets = [0, 0], sizes = [32, 128], strides = [1, 1]} : vector<32x288xf32> to vector<32x128xf32>
    %143 = vector.extract_strided_slice %141 {offsets = [0, 128], sizes = [32, 128], strides = [1, 1]} : vector<32x288xf32> to vector<32x128xf32>
    %144 = vector.extract_strided_slice %141 {offsets = [0, 256], sizes = [32, 32], strides = [1, 1]} : vector<32x288xf32> to vector<32x32xf32>
    %c1_44 = arith.constant 1 : index
    %c0_45 = arith.constant 0 : index
    %c0_46 = arith.constant 0 : index
    %145 = vector.load %arg4[%c1_44, %c0_45, %c0_46] : memref<2x128x32xf32, #tpu.memory_space<vmem>>, vector<1x128x32xf32>
    %146 = vector.shape_cast %145 : vector<1x128x32xf32> to vector<128x32xf32>
    %cst_47 = arith.constant dense<0.000000e+00> : vector<16xf32>
    %147 = vector.multi_reduction <add>, %131, %cst_47 [1] : vector<16x32xf32> to vector<16xf32>
    %148 = vector.shape_cast %147 : vector<16xf32> to vector<16x1xf32>
    %cst_48 = arith.constant 3.200000e+01 : f32
    %149 = vector.broadcast %cst_48 : f32 to vector<16x1xf32>
    %150 = arith.divf %148, %149 : vector<16x1xf32>
    %151 = vector.broadcast %150 : vector<16x1xf32> to vector<16x32xf32>
    %152 = arith.subf %131, %151 : vector<16x32xf32>
    %153 = arith.mulf %152, %152 : vector<16x32xf32>
    %cst_49 = arith.constant dense<0.000000e+00> : vector<16xf32>
    %154 = vector.multi_reduction <add>, %153, %cst_49 [1] : vector<16x32xf32> to vector<16xf32>
    %155 = vector.shape_cast %154 : vector<16xf32> to vector<16x1xf32>
    %cst_50 = arith.constant 3.200000e+01 : f32
    %156 = vector.broadcast %cst_50 : f32 to vector<16x1xf32>
    %157 = arith.divf %155, %156 : vector<16x1xf32>
    %158 = vector.broadcast %150 : vector<16x1xf32> to vector<16x32xf32>
    %159 = arith.subf %131, %158 : vector<16x32xf32>
    %cst_51 = arith.constant 9.99999974E-6 : f32
    %160 = vector.broadcast %cst_51 : f32 to vector<16x1xf32>
    %161 = arith.addf %157, %160 : vector<16x1xf32>
    %162 = math.rsqrt %161 : vector<16x1xf32>
    %163 = vector.broadcast %162 : vector<16x1xf32> to vector<16x32xf32>
    %164 = arith.mulf %159, %163 : vector<16x32xf32>
    %165 = vector.broadcast %132 : vector<1x32xf32> to vector<16x32xf32>
    %166 = arith.mulf %164, %165 : vector<16x32xf32>
    %167 = vector.broadcast %133 : vector<1x32xf32> to vector<16x32xf32>
    %168 = arith.addf %166, %167 : vector<16x32xf32>
    %cst_52 = arith.constant dense<0.000000e+00> : vector<16x128xf32>
    %169 = tpu.matmul %168, %142, %cst_52 {dimension_numbers = #tpu.dot_dimension_numbers<[1], [0], [0], [1], [0, 0, 1, 1], [], []>} : vector<16x32xf32>, vector<32x128xf32>, vector<16x128xf32> -> vector<16x128xf32>
    %170 = vector.broadcast %134 : vector<1x128xf32> to vector<16x128xf32>
    %171 = arith.addf %169, %170 : vector<16x128xf32>
    %172 = arith.mulf %171, %2 : vector<16x128xf32>
    %c127_i32_53 = arith.constant 127 : i32
    %173 = tpu.dynamic_rotate %171 by %c127_i32_53 dim 1 : vector<16x128xf32>, i32 -> vector<16x128xf32>
    %174 = arith.mulf %173, %4 : vector<16x128xf32>
    %175 = arith.addf %172, %174 : vector<16x128xf32>
    %c1_i32_54 = arith.constant 1 : i32
    %176 = tpu.dynamic_rotate %171 by %c1_i32_54 dim 1 : vector<16x128xf32>, i32 -> vector<16x128xf32>
    %177 = arith.mulf %176, %6 : vector<16x128xf32>
    %178 = arith.addf %175, %177 : vector<16x128xf32>
    %179 = vector.extract_strided_slice %178 {offsets = [0, 0], sizes = [16, 32], strides = [1, 1]} : vector<16x128xf32> to vector<16x32xf32>
    %180 = vector.extract_strided_slice %178 {offsets = [0, 32], sizes = [16, 32], strides = [1, 1]} : vector<16x128xf32> to vector<16x32xf32>
    %181 = vector.extract_strided_slice %178 {offsets = [0, 64], sizes = [16, 32], strides = [1, 1]} : vector<16x128xf32> to vector<16x32xf32>
    %182 = vector.shape_cast %180 : vector<16x32xf32> to vector<1x16x32xf32>
    %183 = vector.broadcast %182 : vector<1x16x32xf32> to vector<4x16x32xf32>
    %184 = vector.broadcast %11 : vector<4x1x32xf32> to vector<4x16x32xf32>
    %185 = arith.mulf %183, %184 : vector<4x16x32xf32>
    %186 = vector.shape_cast %181 : vector<16x32xf32> to vector<1x16x32xf32>
    %187 = vector.broadcast %186 : vector<1x16x32xf32> to vector<4x16x32xf32>
    %188 = vector.broadcast %11 : vector<4x1x32xf32> to vector<4x16x32xf32>
    %189 = arith.mulf %187, %188 : vector<4x16x32xf32>
    %190 = vector.shape_cast %179 : vector<16x32xf32> to vector<1x16x32xf32>
    %191 = vector.shape_cast %190 : vector<1x16x32xf32> to vector<1x16x32xf32>
    %192 = vector.broadcast %191 : vector<1x16x32xf32> to vector<4x16x32xf32>
    "tpu.trace_start"() <{level = 10 : i32, message = "hic,hjc->hij"}> : () -> ()
    %cst_55 = arith.constant dense<0.000000e+00> : vector<4x16x16xf32>
    %193 = tpu.matmul %192, %185, %cst_55 {dimension_numbers = #tpu.dot_dimension_numbers<[2], [2], [1], [1], [0, 0, 0, 1, 1, 1], [0], [0]>} : vector<4x16x32xf32>, vector<4x16x32xf32>, vector<4x16x16xf32> -> vector<4x16x16xf32>
    "tpu.trace_stop"() : () -> ()
    %cst_56 = arith.constant 0.353553385 : f32
    %194 = vector.broadcast %cst_56 : f32 to vector<4x16x16xf32>
    %195 = arith.mulf %193, %194 : vector<4x16x16xf32>
    %196 = vector.broadcast %9 : vector<1x16x16xf32> to vector<4x16x16xf32>
    %197 = arith.addf %195, %196 : vector<4x16x16xf32>
    %cst_57 = arith.constant dense<0xFF800000> : vector<4x16xf32>
    %198 = vector.multi_reduction <maximumf>, %197, %cst_57 [2] : vector<4x16x16xf32> to vector<4x16xf32>
    %cst_58 = arith.constant 0xFF800000 : f32
    %199 = vector.broadcast %cst_58 : f32 to vector<4x16xf32>
    %200 = arith.maximumf %199, %198 : vector<4x16xf32>
    %201 = vector.shape_cast %200 : vector<4x16xf32> to vector<4x16x1xf32>
    %202 = vector.broadcast %201 : vector<4x16x1xf32> to vector<4x16x16xf32>
    %203 = arith.subf %197, %202 : vector<4x16x16xf32>
    %204 = math.exp %203 : vector<4x16x16xf32>
    %cst_59 = arith.constant dense<0.000000e+00> : vector<4x16xf32>
    %205 = vector.multi_reduction <add>, %204, %cst_59 [2] : vector<4x16x16xf32> to vector<4x16xf32>
    %206 = vector.shape_cast %205 : vector<4x16xf32> to vector<4x16x1xf32>
    %207 = vector.broadcast %206 : vector<4x16x1xf32> to vector<4x16x16xf32>
    %208 = arith.divf %204, %207 : vector<4x16x16xf32>
    "tpu.trace_start"() <{level = 10 : i32, message = "hij,hjc->hic"}> : () -> ()
    %cst_60 = arith.constant dense<0.000000e+00> : vector<4x16x32xf32>
    %209 = tpu.matmul %208, %189, %cst_60 {dimension_numbers = #tpu.dot_dimension_numbers<[2], [1], [1], [2], [0, 0, 0, 1, 1, 2], [0], [0]>} : vector<4x16x16xf32>, vector<4x16x32xf32>, vector<4x16x32xf32> -> vector<4x16x32xf32>
    "tpu.trace_stop"() : () -> ()
    %cst_61 = arith.constant dense<0.000000e+00> : vector<16x32xf32>
    %210 = vector.multi_reduction <add>, %209, %cst_61 [0] : vector<4x16x32xf32> to vector<16x32xf32>
    %cst_62 = arith.constant dense<0.000000e+00> : vector<16x32xf32>
    %211 = tpu.matmul %210, %144, %cst_62 {dimension_numbers = #tpu.dot_dimension_numbers<[1], [0], [0], [1], [0, 0, 1, 1], [], []>} : vector<16x32xf32>, vector<32x32xf32>, vector<16x32xf32> -> vector<16x32xf32>
    %212 = vector.broadcast %135 : vector<1x32xf32> to vector<16x32xf32>
    %213 = arith.addf %211, %212 : vector<16x32xf32>
    %cst_63 = arith.constant dense<0.000000e+00> : vector<16xf32>
    %214 = vector.multi_reduction <add>, %131, %cst_63 [1] : vector<16x32xf32> to vector<16xf32>
    %215 = vector.shape_cast %214 : vector<16xf32> to vector<16x1xf32>
    %cst_64 = arith.constant 3.200000e+01 : f32
    %216 = vector.broadcast %cst_64 : f32 to vector<16x1xf32>
    %217 = arith.divf %215, %216 : vector<16x1xf32>
    %218 = vector.broadcast %217 : vector<16x1xf32> to vector<16x32xf32>
    %219 = arith.subf %131, %218 : vector<16x32xf32>
    %220 = arith.mulf %219, %219 : vector<16x32xf32>
    %cst_65 = arith.constant dense<0.000000e+00> : vector<16xf32>
    %221 = vector.multi_reduction <add>, %220, %cst_65 [1] : vector<16x32xf32> to vector<16xf32>
    %222 = vector.shape_cast %221 : vector<16xf32> to vector<16x1xf32>
    %cst_66 = arith.constant 3.200000e+01 : f32
    %223 = vector.broadcast %cst_66 : f32 to vector<16x1xf32>
    %224 = arith.divf %222, %223 : vector<16x1xf32>
    %225 = vector.broadcast %217 : vector<16x1xf32> to vector<16x32xf32>
    %226 = arith.subf %131, %225 : vector<16x32xf32>
    %cst_67 = arith.constant 9.99999974E-6 : f32
    %227 = vector.broadcast %cst_67 : f32 to vector<16x1xf32>
    %228 = arith.addf %224, %227 : vector<16x1xf32>
    %229 = math.rsqrt %228 : vector<16x1xf32>
    %230 = vector.broadcast %229 : vector<16x1xf32> to vector<16x32xf32>
    %231 = arith.mulf %226, %230 : vector<16x32xf32>
    %232 = vector.broadcast %136 : vector<1x32xf32> to vector<16x32xf32>
    %233 = arith.mulf %231, %232 : vector<16x32xf32>
    %234 = vector.broadcast %137 : vector<1x32xf32> to vector<16x32xf32>
    %235 = arith.addf %233, %234 : vector<16x32xf32>
    %cst_68 = arith.constant dense<0.000000e+00> : vector<16x128xf32>
    %236 = tpu.matmul %235, %143, %cst_68 {dimension_numbers = #tpu.dot_dimension_numbers<[1], [0], [0], [1], [0, 0, 1, 1], [], []>} : vector<16x32xf32>, vector<32x128xf32>, vector<16x128xf32> -> vector<16x128xf32>
    %237 = vector.broadcast %138 : vector<1x128xf32> to vector<16x128xf32>
    %238 = arith.addf %236, %237 : vector<16x128xf32>
    %cst_69 = arith.constant 5.000000e-01 : f32
    %239 = vector.broadcast %cst_69 : f32 to vector<16x128xf32>
    %240 = arith.mulf %239, %238 : vector<16x128xf32>
    %cst_70 = arith.constant 1.41421354 : f32
    %241 = vector.broadcast %cst_70 : f32 to vector<16x128xf32>
    %242 = arith.divf %238, %241 : vector<16x128xf32>
    %243 = math.erf %242 : vector<16x128xf32>
    %cst_71 = arith.constant 1.000000e+00 : f32
    %244 = vector.broadcast %cst_71 : f32 to vector<16x128xf32>
    %245 = arith.addf %244, %243 : vector<16x128xf32>
    %246 = arith.mulf %240, %245 : vector<16x128xf32>
    %cst_72 = arith.constant dense<0.000000e+00> : vector<16x32xf32>
    %247 = tpu.matmul %246, %146, %cst_72 {dimension_numbers = #tpu.dot_dimension_numbers<[1], [0], [0], [1], [0, 0, 1, 1], [], []>} : vector<16x128xf32>, vector<128x32xf32>, vector<16x32xf32> -> vector<16x32xf32>
    %248 = vector.broadcast %139 : vector<1x32xf32> to vector<16x32xf32>
    %249 = arith.addf %247, %248 : vector<16x32xf32>
    %250 = arith.addf %213, %249 : vector<16x32xf32>
    %251 = arith.addf %250, %131 : vector<16x32xf32>
    %252 = vector.extract_strided_slice %7 {offsets = [16, 0], sizes = [1, 32], strides = [1, 1]} : vector<22x128xf32> to vector<1x32xf32>
    %253 = vector.extract_strided_slice %7 {offsets = [17, 0], sizes = [1, 32], strides = [1, 1]} : vector<22x128xf32> to vector<1x32xf32>
    %cst_73 = arith.constant dense<0.000000e+00> : vector<16xf32>
    %254 = vector.multi_reduction <add>, %251, %cst_73 [1] : vector<16x32xf32> to vector<16xf32>
    %255 = vector.shape_cast %254 : vector<16xf32> to vector<16x1xf32>
    %cst_74 = arith.constant 3.200000e+01 : f32
    %256 = vector.broadcast %cst_74 : f32 to vector<16x1xf32>
    %257 = arith.divf %255, %256 : vector<16x1xf32>
    %258 = vector.broadcast %257 : vector<16x1xf32> to vector<16x32xf32>
    %259 = arith.subf %251, %258 : vector<16x32xf32>
    %260 = arith.mulf %259, %259 : vector<16x32xf32>
    %cst_75 = arith.constant dense<0.000000e+00> : vector<16xf32>
    %261 = vector.multi_reduction <add>, %260, %cst_75 [1] : vector<16x32xf32> to vector<16xf32>
    %262 = vector.shape_cast %261 : vector<16xf32> to vector<16x1xf32>
    %cst_76 = arith.constant 3.200000e+01 : f32
    %263 = vector.broadcast %cst_76 : f32 to vector<16x1xf32>
    %264 = arith.divf %262, %263 : vector<16x1xf32>
    %265 = vector.broadcast %257 : vector<16x1xf32> to vector<16x32xf32>
    %266 = arith.subf %251, %265 : vector<16x32xf32>
    %cst_77 = arith.constant 9.99999974E-6 : f32
    %267 = vector.broadcast %cst_77 : f32 to vector<16x1xf32>
    %268 = arith.addf %264, %267 : vector<16x1xf32>
    %269 = math.rsqrt %268 : vector<16x1xf32>
    %270 = vector.broadcast %269 : vector<16x1xf32> to vector<16x32xf32>
    %271 = arith.mulf %266, %270 : vector<16x32xf32>
    %272 = vector.broadcast %252 : vector<1x32xf32> to vector<16x32xf32>
    %273 = arith.mulf %271, %272 : vector<16x32xf32>
    %274 = vector.broadcast %253 : vector<1x32xf32> to vector<16x32xf32>
    %275 = arith.addf %273, %274 : vector<16x32xf32>
    %c2_78 = arith.constant 2 : index
    %c0_79 = arith.constant 0 : index
    %c0_80 = arith.constant 0 : index
    %276 = vector.load %arg3[%c2_78, %c0_79, %c0_80] : memref<3x32x288xf32, #tpu.memory_space<vmem>>, vector<1x32x288xf32>
    %277 = vector.shape_cast %276 : vector<1x32x288xf32> to vector<32x288xf32>
    %278 = vector.extract_strided_slice %277 {offsets = [0, 0], sizes = [32, 256], strides = [1, 1]} : vector<32x288xf32> to vector<32x256xf32>
    %cst_81 = arith.constant dense<0.000000e+00> : vector<16x256xf32>
    %279 = tpu.matmul %275, %278, %cst_81 {dimension_numbers = #tpu.dot_dimension_numbers<[1], [0], [0], [1], [0, 0, 1, 1], [], []>} : vector<16x32xf32>, vector<32x256xf32>, vector<16x256xf32> -> vector<16x256xf32>
    %c0_82 = arith.constant 0 : index
    %c0_83 = arith.constant 0 : index
    %280 = vector.load %arg6[%c0_82, %c0_83] : memref<16x256xf32, #tpu.memory_space<vmem>>, vector<16x256xf32>
    tpu.vector_store %arg6[%c0_82, %c0_83], %279 {strides = array<i32>} : memref<16x256xf32, #tpu.memory_space<vmem>>, vector<16x256xf32>,
    return
  }
}

</mosaic_0001>

<llo_original>
// kernel: tpu_custom_call.1
$region0: #{tpu_custom_call.1}
  #allocation0 [shape = 'u32[]', space=smem, size = 0x4, offset = 0x4, fixed_abs, tag = 'smem constant byte address 0x4 - core index']
  #allocation1 [shape = 'u32[72,128]{1,0:T(1,128)}', space=vmem, size = 0x9000, scoped, tag = 'internal scratch']
  %s0 = inlined_call_operand.hbm [shape: f32[16,32], index: 0, kind: input, shape index: {}]
  %s1 = inlined_call_operand.hbm [shape: f32[3,16,128], index: 1, kind: input, shape index: {}]
  %s2 = inlined_call_operand.hbm [shape: f32[16,16], index: 2, kind: input, shape index: {}]
  %s3 = inlined_call_operand.vmem [shape: f32[3,32,288], index: 3, kind: input, shape index: {}]
  %s4 = inlined_call_operand.vmem [shape: f32[2,128,32], index: 4, kind: input, shape index: {}]
  %s5 = inlined_call_operand.vmem [shape: f32[22,128], index: 5, kind: input, shape index: {}]
  %s6 = inlined_call_operand.hbm [shape: f32[16,256], index: 6, kind: output, shape index: {}]
  %s7 = sld [smem:[#allocation0]]
  $region46: #{tpu_custom_call.1} parent=0
    _
  %s9 = ssub.s32 1, %s7
  %s10 = scalar_select 0, %s9, %s7
  $region1: #{tpu_custom_call.1} parent=0
    #allocation2 [shape = 'u8[8192]{0}', space=vmem, size = 0x2000, scoped, tag = 'input window, operand 0, single buffered']
    #allocation3 [shape = 's32[1]{0}', space=sflag, size = 0x4, scoped, tag = 'scoped memory for tpu_custom_call.1']
    #allocation4 [shape = 's32[1]{0}', space=sflag, size = 0x4, scoped, tag = 'scoped memory for tpu_custom_call.1']
    #allocation5 [shape = 'u8[24576]{0}', space=vmem, size = 0x6000, scoped, tag = 'input window, operand 1, single buffered']
    #allocation6 [shape = 's32[1]{0}', space=sflag, size = 0x4, scoped, tag = 'scoped memory for tpu_custom_call.1']
    #allocation7 [shape = 'u8[8192]{0}', space=vmem, size = 0x2000, scoped, tag = 'input window, operand 2, single buffered']
    #allocation8 [shape = 'u8[16384]{0}', space=vmem, size = 0x4000, scoped, tag = 'output window, operand 0, single buffered']
    %11 = vsyncpa [#allocation3], 0
    %12 = vsyncpa [#allocation6], 0
    %13 = vsyncpa [#allocation4], 0
    // Predicated region
    $region2: #{tpu_custom_call.1} parent=1 // pred_check
      _
    $region3: #{tpu_custom_call.1} parent=1 // pred_check_branch
      %15 = sbr.rel (0) target = $region5
    $region4: #{tpu_custom_call.1} parent=1 // pred_region
      %17 = vsyncadd [#allocation3], 0
      %s18 = sshll.u32 %s0, 4
      %s19 = int_to_ptr.hbm [resolvable:$true] %s18
      %s20 = sshll.u32 [#allocation2], 4
      %s21 = int_to_ptr.vmem [resolvable:$true] %s20
      %26 = dma.hbm_to_vmem [thread:$0]  %s19, 256, %s21, [#allocation3], 128, 128, 8
    $region5: #{tpu_custom_call.1} parent=1 // pred_fallthru
      _
    // Predicated region
    $region6: #{tpu_custom_call.1} parent=1 // pred_check
      _
    $region7: #{tpu_custom_call.1} parent=1 // pred_check_branch
      %28 = sbr.rel (0) target = $region9
    $region8: #{tpu_custom_call.1} parent=1 // pred_region
      %30 = vsyncadd [#allocation6], 0
      %s31 = sshll.u32 %s1, 4
      %s32 = int_to_ptr.hbm [resolvable:$true] %s31
      %s33 = sshll.u32 [#allocation5], 4
      %s34 = int_to_ptr.vmem [resolvable:$true] %s33
      %39 = dma.hbm_to_vmem [thread:$0]  %s32, 768, %s34, [#allocation6], 128, 128, 8
    $region9: #{tpu_custom_call.1} parent=1 // pred_fallthru
      _
    // Predicated region
    $region10: #{tpu_custom_call.1} parent=1 // pred_check
      _
    $region11: #{tpu_custom_call.1} parent=1 // pred_check_branch
      %41 = sbr.rel (0) target = $region13
    $region12: #{tpu_custom_call.1} parent=1 // pred_region
      %43 = vsyncadd [#allocation6], 0
      %s44 = sshll.u32 %s2, 4
      %s45 = int_to_ptr.hbm [resolvable:$true] %s44
      %s46 = sshll.u32 [#allocation7], 4
      %s47 = int_to_ptr.vmem [resolvable:$true] %s46
      %52 = dma.hbm_to_vmem [thread:$0]  %s45, 256, %s47, [#allocation6], 128, 128, 8
    $region13: #{tpu_custom_call.1} parent=1 // pred_fallthru
      _
    // Predicated region
    $region14: #{tpu_custom_call.1} parent=1 // pred_check
      _
    $region15: #{tpu_custom_call.1} parent=1 // pred_check_branch
      %54 = sbr.rel (0) target = $region17
    $region16: #{tpu_custom_call.1} parent=1 // pred_region
      _
    $region17: #{tpu_custom_call.1} parent=1 // pred_fallthru
      _
    // Predicated region
    $region18: #{tpu_custom_call.1} parent=1 // pred_check
      _
    $region19: #{tpu_custom_call.1} parent=1 // pred_check_branch
      %56 = sbr.rel (0) target = $region21
    $region20: #{tpu_custom_call.1} parent=1 // pred_region
      _
    $region21: #{tpu_custom_call.1} parent=1 // pred_fallthru
      _
    // Predicated region
    $region22: #{tpu_custom_call.1} parent=1 // pred_check
      _
    $region23: #{tpu_custom_call.1} parent=1 // pred_check_branch
      %58 = sbr.rel (0) target = $region25
    $region24: #{tpu_custom_call.1} parent=1 // pred_region
      _
    $region25: #{tpu_custom_call.1} parent=1 // pred_fallthru
      _
    // Predicated region
    $region26: #{tpu_custom_call.1} parent=1 // pred_check
      _
    $region27: #{tpu_custom_call.1} parent=1 // pred_check_branch
      %60 = sbr.rel (0) target = $region29
    $region28: #{tpu_custom_call.1} parent=1 // pred_region
      %62 = dma.done [#allocation3], 256
    $region29: #{tpu_custom_call.1} parent=1 // pred_fallthru
      _
    // Predicated region
    $region30: #{tpu_custom_call.1} parent=1 // pred_check
      _
    $region31: #{tpu_custom_call.1} parent=1 // pred_check_branch
      %64 = sbr.rel (0) target = $region33
    $region32: #{tpu_custom_call.1} parent=1 // pred_region
      %66 = dma.done [#allocation6], 768
    $region33: #{tpu_custom_call.1} parent=1 // pred_fallthru
      _
    // Predicated region
    $region34: #{tpu_custom_call.1} parent=1 // pred_check
      _
    $region35: #{tpu_custom_call.1} parent=1 // pred_check_branch
      %68 = sbr.rel (0) target = $region37
    $region36: #{tpu_custom_call.1} parent=1 // pred_region
      %70 = dma.done [#allocation6], 256
    $region37: #{tpu_custom_call.1} parent=1 // pred_fallthru
      _
    %v71 = vld [vmem:[#allocation2] sm:$0xff]
    %v72 = vld [vmem:[#allocation2 + $0x8] sm:$0xff]
    %v73 = vld [vmem:[#allocation5] sm:$0xff]
    %v74 = vld [vmem:[#allocation5 + $0x8] sm:$0xff]
    %s75 = scalar_lea.vmem [#allocation5], 16
    %v76 = vld [vmem:[%s75] sm:$0xff]
    %v77 = vld [vmem:[%s75 + $0x8] sm:$0xff]
    %s78 = scalar_lea.vmem [#allocation5], 32
    %v79 = vld [vmem:[%s78] sm:$0xff]
    %v80 = vld [vmem:[%s78 + $0x8] sm:$0xff]
    %v81 = vld [vmem:[%s5] sm:$0xff]
    %v82 = vld [vmem:[%s5 + $0x8] sm:$0xff]
    %v83 = vld [vmem:[%s5 + $0x10] sm:$0x3f]
    %v84 = vld [vmem:[#allocation7] sm:$0xff]
    %v85 = vld [vmem:[#allocation7 + $0x8] sm:$0xff]
    %87 = vst [vmem:[#allocation1] sm:$0xff] %v83
    %s88 = scalar_lea.vmem [#allocation1], 2
    %v89 = vld [vmem:[%s88] ss:$9 sm:$0xff]
    %s90 = scalar_lea.vmem [#allocation1], 3
    %v91 = vld [vmem:[%s90] ss:$9 sm:$0xff]
    %s92 = scalar_lea.vmem [#allocation1], 4
    %v93 = vld [vmem:[%s92] ss:$9 sm:$0xff]
    %s94 = scalar_lea.vmem [#allocation1], 5
    %v95 = vld [vmem:[%s94] ss:$9 sm:$0xff]
    %v96 = vld [vmem:[%s3] sm:$0xff]
    %v97 = vld [vmem:[%s3 + $0x8] sm:$0xff]
    %v98 = vld [vmem:[%s3 + $0x10] sm:$0xff]
    %v99 = vld [vmem:[%s3 + $0x18] sm:$0xff]
    %v100 = vld [vmem:[%s3 + $0x20] sm:$0xff]
    %v101 = vld [vmem:[%s3 + $0x28] sm:$0xff]
    %v102 = vld [vmem:[%s3 + $0x30] sm:$0xff]
    %v103 = vld [vmem:[%s3 + $0x38] sm:$0xff]
    %v104 = vld [vmem:[%s3 + $0x40] sm:$0xff]
    %v105 = vld [vmem:[%s3 + $0x48] sm:$0xff]
    %v106 = vld [vmem:[%s3 + $0x50] sm:$0xff]
    %v107 = vld [vmem:[%s3 + $0x58] sm:$0xff]
    %v108 = vld [vmem:[%s4] sm:$0xff]
    %v109 = vld [vmem:[%s4 + $0x8] sm:$0xff]
    %v110 = vld [vmem:[%s4 + $0x10] sm:$0xff]
    %v111 = vld [vmem:[%s4 + $0x18] sm:$0xff]
    %v112 = vld [vmem:[%s4 + $0x20] sm:$0xff]
    %v113 = vld [vmem:[%s4 + $0x28] sm:$0xff]
    %v114 = vld [vmem:[%s4 + $0x30] sm:$0xff]
    %v115 = vld [vmem:[%s4 + $0x38] sm:$0xff]
    %v116 = vld [vmem:[%s4 + $0x40] sm:$0xff]
    %v117 = vld [vmem:[%s4 + $0x48] sm:$0xff]
    %v118 = vld [vmem:[%s4 + $0x50] sm:$0xff]
    %v119 = vld [vmem:[%s4 + $0x58] sm:$0xff]
    %v120 = vld [vmem:[%s4 + $0x60] sm:$0xff]
    %v121 = vld [vmem:[%s4 + $0x68] sm:$0xff]
    %v122 = vld [vmem:[%s4 + $0x70] sm:$0xff]
    %v123 = vld [vmem:[%s4 + $0x78] sm:$0xff]
    %vm124 = vcmask 261120
    %v125 = vsel %vm124, %v71, 0.0
    %126 = vadd.xlane.f32.xlu0 %v125
    %v127 = vpop.xlane.xlu0 %126
    %v128 = vsel %vm124, %v72, 0.0
    %129 = vadd.xlane.f32.xlu0 %v128
    %v130 = vpop.xlane.xlu0 %129
    %v131 = vrcp.pop 32.0
    %v132 = vmul.f32 32.0, %v131
    %v133 = vsub.f32 1.0, %v132
    %v134 = vmul.f32 %v131, %v133
    %v135 = vadd.f32 %v131, %v134
    %vm136 = vweird.f32 %v131
    %v137 = vsel %vm136, %v131, %v135
    %v138 = vmul.f32 %v127, %v137
    %v139 = vmul.f32 %v130, %v137
    %v140 = vsub.f32 %v71, %v138
    %v141 = vsub.f32 %v72, %v139
    %v142 = vmul.f32 %v140, %v140
    %v143 = vmul.f32 %v141, %v141
    %v144 = vsel %vm124, %v142, 0.0
    %145 = vadd.xlane.f32.xlu0 %v144
    %v146 = vpop.xlane.xlu0 %145
    %v147 = vsel %vm124, %v143, 0.0
    %148 = vadd.xlane.f32.xlu0 %v147
    %v149 = vpop.xlane.xlu0 %148
    %v150 = vmul.f32 %v146, %v137
    %v151 = vmul.f32 %v149, %v137
    %v152 = vadd.f32 %v150, 1e-05
    %v153 = vadd.f32 %v151, 1e-05
    %v154 = vrsqrt.pop %v152
    %v155 = vmul.f32 %v154, %v152
    %v156 = vmul.f32 %v155, %v154
    %v157 = vmul.f32 0.5, %v156
    %v158 = vsub.f32 1.5, %v157
    %v159 = vmul.f32 %v154, %v158
    %vm160 = vweird.f32 %v152
    %vm161 = vweird.f32 %v154
    %vm162 = vmor %vm160, %vm161
    %v163 = vsel %vm162, %v154, %v159
    %v164 = vrsqrt.pop %v153
    %v165 = vmul.f32 %v164, %v153
    %v166 = vmul.f32 %v165, %v164
    %v167 = vmul.f32 0.5, %v166
    %v168 = vsub.f32 1.5, %v167
    %v169 = vmul.f32 %v164, %v168
    %vm170 = vweird.f32 %v153
    %vm171 = vweird.f32 %v164
    %vm172 = vmor %vm170, %vm171
    %v173 = vsel %vm172, %v164, %v169
    %v174 = vmul.f32 %v140, %v163
    %v175 = vmul.f32 %v141, %v173
    %v176 = vperm.slane %v81, 0
    %v177 = vmul.f32 %v174, %v176
    %v178 = vmul.f32 %v175, %v176
    %v179 = vperm.slane %v81, 1
    %v180 = vadd.f32 %v177, %v179
    %v181 = vadd.f32 %v178, %v179
    %v182 = vperm.slane %v81, 2
    %v184 = vsel %vm124, %v180, 0
    %v187 = vsel %vm124, %v181, 0
    %189 = vmatpush.msra.mxu0 0.0
    %190 = vmatpush.msra.mxu0 0.0
    %191 = vmatpush.msra.mxu0 0.0
    %192 = vmatpush.msra.mxu0 0.0
    %193 = vmatpush.msra.mxu0 0.0
    %194 = vmatpush.msra.mxu0 0.0
    %195 = vmatpush.msra.mxu0 0.0
    %196 = vmatpush.msra.mxu0 0.0
    %197 = vmatpush.msra.mxu0 0.0
    %198 = vmatpush.msra.mxu0 0.0
    %199 = vmatpush.msra.mxu0 0.0
    %200 = vmatpush.msra.mxu0 0.0
    %201 = vmatpush.msra.mxu0 %v105
    %202 = vmatpush.msra.mxu0 %v102
    %203 = vmatpush.msra.mxu0 %v99
    %204 = vmatpush.msra.mxu0 %v96
    %205 = vmatmul.f32.gmra.mxu0 %v184
    %v206 = vpop.f32.mrf.mxu0
    %v207 = vadd.f32 %v182, %v206
    %208 = vmatmul.f32.gmra.mxu0 %v187
    %v209 = vpop.f32.mrf.mxu0
    %v210 = vadd.f32 %v182, %v209
    %211 = vdwg.mxu0
    %v212 = vmul.f32 %v207, %v73
    %v213 = vmul.f32 %v210, %v74
    %214 = vrot.lane.b32.xlu0 %v207, 127
    %v215 = vpop.permute.xlu0 %214
    %216 = vrot.lane.b32.xlu0 %v210, 127
    %v217 = vpop.permute.xlu0 %216
    %v218 = vmul.f32 %v215, %v76
    %v219 = vmul.f32 %v217, %v77
    %v220 = vadd.f32 %v212, %v218
    %v221 = vadd.f32 %v213, %v219
    %222 = vrot.lane.b32.xlu0 %v207, 1
    %v223 = vpop.permute.xlu0 %222
    %224 = vrot.lane.b32.xlu0 %v210, 1
    %v225 = vpop.permute.xlu0 %224
    %v226 = vmul.f32 %v223, %v79
    %v227 = vmul.f32 %v225, %v80
    %v228 = vadd.f32 %v220, %v226
    %v229 = vadd.f32 %v221, %v227
    %v230 = vperm.slane %v89, 0
    %v231 = vperm.slane %v91, 0
    %v232 = vperm.slane %v93, 0
    %v233 = vperm.slane %v95, 0
    %234 = vrot.lane.b32.xlu0 %v230, 32
    %v235 = vpop.permute.xlu0 %234
    %236 = vrot.lane.b32.xlu0 %v231, 32
    %v237 = vpop.permute.xlu0 %236
    %238 = vrot.lane.b32.xlu0 %v232, 32
    %v239 = vpop.permute.xlu0 %238
    %240 = vrot.lane.b32.xlu0 %v233, 32
    %v241 = vpop.permute.xlu0 %240
    %v246 = vmul.f32 %v228, %v235
    %v247 = vmul.f32 %v229, %v235
    %v248 = vmul.f32 %v228, %v237
    %v249 = vmul.f32 %v229, %v237
    %v250 = vmul.f32 %v228, %v239
    %v251 = vmul.f32 %v229, %v239
    %v252 = vmul.f32 %v228, %v241
    %v253 = vmul.f32 %v229, %v241
    %254 = vrot.lane.b32.xlu0 %v230, 64
    %v255 = vpop.permute.xlu0 %254
    %256 = vrot.lane.b32.xlu0 %v231, 64
    %v257 = vpop.permute.xlu0 %256
    %258 = vrot.lane.b32.xlu0 %v232, 64
    %v259 = vpop.permute.xlu0 %258
    %260 = vrot.lane.b32.xlu0 %v233, 64
    %v261 = vpop.permute.xlu0 %260
    %v266 = vmul.f32 %v228, %v255
    %v267 = vmul.f32 %v229, %v255
    %v268 = vmul.f32 %v228, %v257
    %v269 = vmul.f32 %v229, %v257
    %v270 = vmul.f32 %v228, %v259
    %v271 = vmul.f32 %v229, %v259
    %v272 = vmul.f32 %v228, %v261
    %v273 = vmul.f32 %v229, %v261
    %276 = vrot.lane.b32.xlu0 %v246, 96
    %v277 = vpop.permute.xlu0 %276
    %278 = vrot.lane.b32.xlu0 %v247, 96
    %v279 = vpop.permute.xlu0 %278
    %v281 = vsel %vm124, %v228, 0
    %v284 = vsel %vm124, %v229, 0
    %v286 = vsel %vm124, %v277, 0
    %v288 = vsel %vm124, %v279, 0
    %290 = vmatpush.xpose.msra.mxu0 0.0
    %291 = vmatpush.xpose.msra.mxu0 0.0
    %292 = vmatpush.xpose.msra.mxu0 0.0
    %293 = vmatpush.xpose.msra.mxu0 0.0
    %294 = vmatpush.xpose.msra.mxu0 0.0
    %295 = vmatpush.xpose.msra.mxu0 0.0
    %296 = vmatpush.xpose.msra.mxu0 0.0
    %297 = vmatpush.xpose.msra.mxu0 0.0
    %298 = vmatpush.xpose.msra.mxu0 0.0
    %299 = vmatpush.xpose.msra.mxu0 0.0
    %300 = vmatpush.xpose.msra.mxu0 0.0
    %301 = vmatpush.xpose.msra.mxu0 0.0
    %302 = vmatpush.xpose.msra.mxu0 0.0
    %303 = vmatpush.xpose.msra.mxu0 0.0
    %304 = vmatpush.xpose.msra.mxu0 %v288
    %305 = vmatpush.xpose.msra.mxu0 %v286
    %306 = vmatmul.f32.gmra.mxu0 %v281
    %v307 = vpop.f32.mrf.mxu0
    %v308 = vadd.f32 0.0, %v307
    %309 = vmatmul.f32.gmra.mxu0 %v284
    %v310 = vpop.f32.mrf.mxu0
    %v311 = vadd.f32 0.0, %v310
    %312 = vdwg.mxu0
    %315 = vrot.lane.b32.xlu0 %v248, 96
    %v316 = vpop.permute.xlu0 %315
    %317 = vrot.lane.b32.xlu0 %v249, 96
    %v318 = vpop.permute.xlu0 %317
    %v319 = vsel %vm124, %v316, 0
    %v321 = vsel %vm124, %v318, 0
    %323 = vmatpush.xpose.msra.mxu0 0.0
    %324 = vmatpush.xpose.msra.mxu0 0.0
    %325 = vmatpush.xpose.msra.mxu0 0.0
    %326 = vmatpush.xpose.msra.mxu0 0.0
    %327 = vmatpush.xpose.msra.mxu0 0.0
    %328 = vmatpush.xpose.msra.mxu0 0.0
    %329 = vmatpush.xpose.msra.mxu0 0.0
    %330 = vmatpush.xpose.msra.mxu0 0.0
    %331 = vmatpush.xpose.msra.mxu0 0.0
    %332 = vmatpush.xpose.msra.mxu0 0.0
    %333 = vmatpush.xpose.msra.mxu0 0.0
    %334 = vmatpush.xpose.msra.mxu0 0.0
    %335 = vmatpush.xpose.msra.mxu0 0.0
    %336 = vmatpush.xpose.msra.mxu0 0.0
    %337 = vmatpush.xpose.msra.mxu0 %v321
    %338 = vmatpush.xpose.msra.mxu0 %v319
    %339 = vmatmul.f32.gmra.mxu0 %v281
    %v340 = vpop.f32.mrf.mxu0
    %v341 = vadd.f32 0.0, %v340
    %342 = vmatmul.f32.gmra.mxu0 %v284
    %v343 = vpop.f32.mrf.mxu0
    %v344 = vadd.f32 0.0, %v343
    %345 = vdwg.mxu0
    %348 = vrot.lane.b32.xlu0 %v250, 96
    %v349 = vpop.permute.xlu0 %348
    %350 = vrot.lane.b32.xlu0 %v251, 96
    %v351 = vpop.permute.xlu0 %350
    %v352 = vsel %vm124, %v349, 0
    %v354 = vsel %vm124, %v351, 0
    %356 = vmatpush.xpose.msra.mxu0 0.0
    %357 = vmatpush.xpose.msra.mxu0 0.0
    %358 = vmatpush.xpose.msra.mxu0 0.0
    %359 = vmatpush.xpose.msra.mxu0 0.0
    %360 = vmatpush.xpose.msra.mxu0 0.0
    %361 = vmatpush.xpose.msra.mxu0 0.0
    %362 = vmatpush.xpose.msra.mxu0 0.0
    %363 = vmatpush.xpose.msra.mxu0 0.0
    %364 = vmatpush.xpose.msra.mxu0 0.0
    %365 = vmatpush.xpose.msra.mxu0 0.0
    %366 = vmatpush.xpose.msra.mxu0 0.0
    %367 = vmatpush.xpose.msra.mxu0 0.0
    %368 = vmatpush.xpose.msra.mxu0 0.0
    %369 = vmatpush.xpose.msra.mxu0 0.0
    %370 = vmatpush.xpose.msra.mxu0 %v354
    %371 = vmatpush.xpose.msra.mxu0 %v352
    %372 = vmatmul.f32.gmra.mxu0 %v281
    %v373 = vpop.f32.mrf.mxu0
    %v374 = vadd.f32 0.0, %v373
    %375 = vmatmul.f32.gmra.mxu0 %v284
    %v376 = vpop.f32.mrf.mxu0
    %v377 = vadd.f32 0.0, %v376
    %378 = vdwg.mxu0
    %381 = vrot.lane.b32.xlu0 %v252, 96
    %v382 = vpop.permute.xlu0 %381
    %383 = vrot.lane.b32.xlu0 %v253, 96
    %v384 = vpop.permute.xlu0 %383
    %v385 = vsel %vm124, %v382, 0
    %v387 = vsel %vm124, %v384, 0
    %389 = vmatpush.xpose.msra.mxu0 0.0
    %390 = vmatpush.xpose.msra.mxu0 0.0
    %391 = vmatpush.xpose.msra.mxu0 0.0
    %392 = vmatpush.xpose.msra.mxu0 0.0
    %393 = vmatpush.xpose.msra.mxu0 0.0
    %394 = vmatpush.xpose.msra.mxu0 0.0
    %395 = vmatpush.xpose.msra.mxu0 0.0
    %396 = vmatpush.xpose.msra.mxu0 0.0
    %397 = vmatpush.xpose.msra.mxu0 0.0
    %398 = vmatpush.xpose.msra.mxu0 0.0
    %399 = vmatpush.xpose.msra.mxu0 0.0
    %400 = vmatpush.xpose.msra.mxu0 0.0
    %401 = vmatpush.xpose.msra.mxu0 0.0
    %402 = vmatpush.xpose.msra.mxu0 0.0
    %403 = vmatpush.xpose.msra.mxu0 %v387
    %404 = vmatpush.xpose.msra.mxu0 %v385
    %405 = vmatmul.f32.gmra.mxu0 %v281
    %v406 = vpop.f32.mrf.mxu0
    %v407 = vadd.f32 0.0, %v406
    %408 = vmatmul.f32.gmra.mxu0 %v284
    %v409 = vpop.f32.mrf.mxu0
    %v410 = vadd.f32 0.0, %v409
    %411 = vdwg.mxu0
    %v412 = vmul.f32 %v308, 0.35355338
    %v413 = vmul.f32 %v311, 0.35355338
    %v414 = vmul.f32 %v341, 0.35355338
    %v415 = vmul.f32 %v344, 0.35355338
    %v416 = vmul.f32 %v374, 0.35355338
    %v417 = vmul.f32 %v377, 0.35355338
    %v418 = vmul.f32 %v407, 0.35355338
    %v419 = vmul.f32 %v410, 0.35355338
    %v420 = vadd.f32 %v412, %v84
    %v421 = vadd.f32 %v413, %v85
    %v422 = vadd.f32 %v414, %v84
    %v423 = vadd.f32 %v415, %v85
    %v424 = vadd.f32 %v416, %v84
    %v425 = vadd.f32 %v417, %v85
    %v426 = vadd.f32 %v418, %v84
    %v427 = vadd.f32 %v419, %v85
    %vm428 = vcmask 130048
    %v429 = vsel %vm428, %v420, -inf
    %430 = vmax.xlane.f32.xlu0 %v429
    %v431 = vpop.xlane.xlu0 %430
    %v432 = vsel %vm428, %v421, -inf
    %433 = vmax.xlane.f32.xlu0 %v432
    %v434 = vpop.xlane.xlu0 %433
    %v435 = vsel %vm428, %v422, -inf
    %436 = vmax.xlane.f32.xlu0 %v435
    %v437 = vpop.xlane.xlu0 %436
    %v438 = vsel %vm428, %v423, -inf
    %439 = vmax.xlane.f32.xlu0 %v438
    %v440 = vpop.xlane.xlu0 %439
    %v441 = vsel %vm428, %v424, -inf
    %442 = vmax.xlane.f32.xlu0 %v441
    %v443 = vpop.xlane.xlu0 %442
    %v444 = vsel %vm428, %v425, -inf
    %445 = vmax.xlane.f32.xlu0 %v444
    %v446 = vpop.xlane.xlu0 %445
    %v447 = vsel %vm428, %v426, -inf
    %448 = vmax.xlane.f32.xlu0 %v447
    %v449 = vpop.xlane.xlu0 %448
    %v450 = vsel %vm428, %v427, -inf
    %451 = vmax.xlane.f32.xlu0 %v450
    %v452 = vpop.xlane.xlu0 %451
    %v453 = vsub.f32 %v420, %v431
    %v454 = vsub.f32 %v421, %v434
    %v455 = vsub.f32 %v422, %v437
    %v456 = vsub.f32 %v423, %v440
    %v457 = vsub.f32 %v424, %v443
    %v458 = vsub.f32 %v425, %v446
    %v459 = vsub.f32 %v426, %v449
    %v460 = vsub.f32 %v427, %v452
    %v461 = vmul.f32 %v453, 1.442695
    %v462 = vpow.pop %v461
    %v463 = vmul.f32 %v454, 1.442695
    %v464 = vpow.pop %v463
    %v465 = vmul.f32 %v455, 1.442695
    %v466 = vpow.pop %v465
    %v467 = vmul.f32 %v456, 1.442695
    %v468 = vpow.pop %v467
    %v469 = vmul.f32 %v457, 1.442695
    %v470 = vpow.pop %v469
    %v471 = vmul.f32 %v458, 1.442695
    %v472 = vpow.pop %v471
    %v473 = vmul.f32 %v459, 1.442695
    %v474 = vpow.pop %v473
    %v475 = vmul.f32 %v460, 1.442695
    %v476 = vpow.pop %v475
    %v477 = vsel %vm428, %v462, 0.0
    %478 = vadd.xlane.f32.xlu0 %v477
    %v479 = vpop.xlane.xlu0 %478
    %v480 = vsel %vm428, %v464, 0.0
    %481 = vadd.xlane.f32.xlu0 %v480
    %v482 = vpop.xlane.xlu0 %481
    %v483 = vsel %vm428, %v466, 0.0
    %484 = vadd.xlane.f32.xlu0 %v483
    %v485 = vpop.xlane.xlu0 %484
    %v486 = vsel %vm428, %v468, 0.0
    %487 = vadd.xlane.f32.xlu0 %v486
    %v488 = vpop.xlane.xlu0 %487
    %v489 = vsel %vm428, %v470, 0.0
    %490 = vadd.xlane.f32.xlu0 %v489
    %v491 = vpop.xlane.xlu0 %490
    %v492 = vsel %vm428, %v472, 0.0
    %493 = vadd.xlane.f32.xlu0 %v492
    %v494 = vpop.xlane.xlu0 %493
    %v495 = vsel %vm428, %v474, 0.0
    %496 = vadd.xlane.f32.xlu0 %v495
    %v497 = vpop.xlane.xlu0 %496
    %v498 = vsel %vm428, %v476, 0.0
    %499 = vadd.xlane.f32.xlu0 %v498
    %v500 = vpop.xlane.xlu0 %499
    %v501 = vrcp.pop %v479
    %v502 = vmul.f32 %v479, %v501
    %v503 = vsub.f32 1.0, %v502
    %v504 = vmul.f32 %v501, %v503
    %v505 = vadd.f32 %v501, %v504
    %vm506 = vweird.f32 %v479
    %vm507 = vweird.f32 %v501
    %vm508 = vmor %vm506, %vm507
    %v509 = vsel %vm508, %v501, %v505
    %v510 = vand.u32 2147483647, %v479
    %vm511 = vcmp.eq.f32.partialorder %v510, 8.507059e+37
    %v512 = vand.u32 %v479, 2147483648
    %v513 = vor.u32 1.1754944e-38, %v512
    %v514 = vsel %vm511, %v513, %v509
    %v515 = vmul.f32 %v462, %v514
    %v516 = vrcp.pop %v482
    %v517 = vmul.f32 %v482, %v516
    %v518 = vsub.f32 1.0, %v517
    %v519 = vmul.f32 %v516, %v518
    %v520 = vadd.f32 %v516, %v519
    %vm521 = vweird.f32 %v482
    %vm522 = vweird.f32 %v516
    %vm523 = vmor %vm521, %vm522
    %v524 = vsel %vm523, %v516, %v520
    %v525 = vand.u32 2147483647, %v482
    %vm526 = vcmp.eq.f32.partialorder %v525, 8.507059e+37
    %v527 = vand.u32 %v482, 2147483648
    %v528 = vor.u32 1.1754944e-38, %v527
    %v529 = vsel %vm526, %v528, %v524
    %v530 = vmul.f32 %v464, %v529
    %v531 = vrcp.pop %v485
    %v532 = vmul.f32 %v485, %v531
    %v533 = vsub.f32 1.0, %v532
    %v534 = vmul.f32 %v531, %v533
    %v535 = vadd.f32 %v531, %v534
    %vm536 = vweird.f32 %v485
    %vm537 = vweird.f32 %v531
    %vm538 = vmor %vm536, %vm537
    %v539 = vsel %vm538, %v531, %v535
    %v540 = vand.u32 2147483647, %v485
    %vm541 = vcmp.eq.f32.partialorder %v540, 8.507059e+37
    %v542 = vand.u32 %v485, 2147483648
    %v543 = vor.u32 1.1754944e-38, %v542
    %v544 = vsel %vm541, %v543, %v539
    %v545 = vmul.f32 %v466, %v544
    %v546 = vrcp.pop %v488
    %v547 = vmul.f32 %v488, %v546
    %v548 = vsub.f32 1.0, %v547
    %v549 = vmul.f32 %v546, %v548
    %v550 = vadd.f32 %v546, %v549
    %vm551 = vweird.f32 %v488
    %vm552 = vweird.f32 %v546
    %vm553 = vmor %vm551, %vm552
    %v554 = vsel %vm553, %v546, %v550
    %v555 = vand.u32 2147483647, %v488
    %vm556 = vcmp.eq.f32.partialorder %v555, 8.507059e+37
    %v557 = vand.u32 %v488, 2147483648
    %v558 = vor.u32 1.1754944e-38, %v557
    %v559 = vsel %vm556, %v558, %v554
    %v560 = vmul.f32 %v468, %v559
    %v561 = vrcp.pop %v491
    %v562 = vmul.f32 %v491, %v561
    %v563 = vsub.f32 1.0, %v562
    %v564 = vmul.f32 %v561, %v563
    %v565 = vadd.f32 %v561, %v564
    %vm566 = vweird.f32 %v491
    %vm567 = vweird.f32 %v561
    %vm568 = vmor %vm566, %vm567
    %v569 = vsel %vm568, %v561, %v565
    %v570 = vand.u32 2147483647, %v491
    %vm571 = vcmp.eq.f32.partialorder %v570, 8.507059e+37
    %v572 = vand.u32 %v491, 2147483648
    %v573 = vor.u32 1.1754944e-38, %v572
    %v574 = vsel %vm571, %v573, %v569
    %v575 = vmul.f32 %v470, %v574
    %v576 = vrcp.pop %v494
    %v577 = vmul.f32 %v494, %v576
    %v578 = vsub.f32 1.0, %v577
    %v579 = vmul.f32 %v576, %v578
    %v580 = vadd.f32 %v576, %v579
    %vm581 = vweird.f32 %v494
    %vm582 = vweird.f32 %v576
    %vm583 = vmor %vm581, %vm582
    %v584 = vsel %vm583, %v576, %v580
    %v585 = vand.u32 2147483647, %v494
    %vm586 = vcmp.eq.f32.partialorder %v585, 8.507059e+37
    %v587 = vand.u32 %v494, 2147483648
    %v588 = vor.u32 1.1754944e-38, %v587
    %v589 = vsel %vm586, %v588, %v584
    %v590 = vmul.f32 %v472, %v589
    %v591 = vrcp.pop %v497
    %v592 = vmul.f32 %v497, %v591
    %v593 = vsub.f32 1.0, %v592
    %v594 = vmul.f32 %v591, %v593
    %v595 = vadd.f32 %v591, %v594
    %vm596 = vweird.f32 %v497
    %vm597 = vweird.f32 %v591
    %vm598 = vmor %vm596, %vm597
    %v599 = vsel %vm598, %v591, %v595
    %v600 = vand.u32 2147483647, %v497
    %vm601 = vcmp.eq.f32.partialorder %v600, 8.507059e+37
    %v602 = vand.u32 %v497, 2147483648
    %v603 = vor.u32 1.1754944e-38, %v602
    %v604 = vsel %vm601, %v603, %v599
    %v605 = vmul.f32 %v474, %v604
    %v606 = vrcp.pop %v500
    %v607 = vmul.f32 %v500, %v606
    %v608 = vsub.f32 1.0, %v607
    %v609 = vmul.f32 %v606, %v608
    %v610 = vadd.f32 %v606, %v609
    %vm611 = vweird.f32 %v500
    %vm612 = vweird.f32 %v606
    %vm613 = vmor %vm611, %vm612
    %v614 = vsel %vm613, %v606, %v610
    %v615 = vand.u32 2147483647, %v500
    %vm616 = vcmp.eq.f32.partialorder %v615, 8.507059e+37
    %v617 = vand.u32 %v500, 2147483648
    %v618 = vor.u32 1.1754944e-38, %v617
    %v619 = vsel %vm616, %v618, %v614
    %v620 = vmul.f32 %v476, %v619
    %623 = vrot.lane.b32.xlu0 %v266, 64
    %v624 = vpop.permute.xlu0 %623
    %625 = vrot.lane.b32.xlu0 %v267, 64
    %v626 = vpop.permute.xlu0 %625
    %v630 = vsel %vm428, %v515, 0
    %v633 = vsel %vm428, %v530, 0
    %635 = vmatpush.msra.mxu0 0.0
    %636 = vmatpush.msra.mxu0 0.0
    %637 = vmatpush.msra.mxu0 0.0
    %638 = vmatpush.msra.mxu0 0.0
    %639 = vmatpush.msra.mxu0 0.0
    %640 = vmatpush.msra.mxu0 0.0
    %641 = vmatpush.msra.mxu0 0.0
    %642 = vmatpush.msra.mxu0 0.0
    %643 = vmatpush.msra.mxu0 0.0
    %644 = vmatpush.msra.mxu0 0.0
    %645 = vmatpush.msra.mxu0 0.0
    %646 = vmatpush.msra.mxu0 0.0
    %647 = vmatpush.msra.mxu0 0.0
    %648 = vmatpush.msra.mxu0 0.0
    %649 = vmatpush.msra.mxu0 %v626
    %650 = vmatpush.msra.mxu0 %v624
    %651 = vmatmul.f32.gmra.mxu0 %v630
    %v652 = vpop.f32.mrf.mxu0
    %v653 = vadd.f32 0.0, %v652
    %654 = vmatmul.f32.gmra.mxu0 %v633
    %v655 = vpop.f32.mrf.mxu0
    %v656 = vadd.f32 0.0, %v655
    %657 = vdwg.mxu0
    %660 = vrot.lane.b32.xlu0 %v268, 64
    %v661 = vpop.permute.xlu0 %660
    %662 = vrot.lane.b32.xlu0 %v269, 64
    %v663 = vpop.permute.xlu0 %662
    %v667 = vsel %vm428, %v545, 0
    %v670 = vsel %vm428, %v560, 0
    %672 = vmatpush.msra.mxu0 0.0
    %673 = vmatpush.msra.mxu0 0.0
    %674 = vmatpush.msra.mxu0 0.0
    %675 = vmatpush.msra.mxu0 0.0
    %676 = vmatpush.msra.mxu0 0.0
    %677 = vmatpush.msra.mxu0 0.0
    %678 = vmatpush.msra.mxu0 0.0
    %679 = vmatpush.msra.mxu0 0.0
    %680 = vmatpush.msra.mxu0 0.0
    %681 = vmatpush.msra.mxu0 0.0
    %682 = vmatpush.msra.mxu0 0.0
    %683 = vmatpush.msra.mxu0 0.0
    %684 = vmatpush.msra.mxu0 0.0
    %685 = vmatpush.msra.mxu0 0.0
    %686 = vmatpush.msra.mxu0 %v663
    %687 = vmatpush.msra.mxu0 %v661
    %688 = vmatmul.f32.gmra.mxu0 %v667
    %v689 = vpop.f32.mrf.mxu0
    %v690 = vadd.f32 0.0, %v689
    %691 = vmatmul.f32.gmra.mxu0 %v670
    %v692 = vpop.f32.mrf.mxu0
    %v693 = vadd.f32 0.0, %v692
    %694 = vdwg.mxu0
    %697 = vrot.lane.b32.xlu0 %v270, 64
    %v698 = vpop.permute.xlu0 %697
    %699 = vrot.lane.b32.xlu0 %v271, 64
    %v700 = vpop.permute.xlu0 %699
    %v704 = vsel %vm428, %v575, 0
    %v707 = vsel %vm428, %v590, 0
    %709 = vmatpush.msra.mxu0 0.0
    %710 = vmatpush.msra.mxu0 0.0
    %711 = vmatpush.msra.mxu0 0.0
    %712 = vmatpush.msra.mxu0 0.0
    %713 = vmatpush.msra.mxu0 0.0
    %714 = vmatpush.msra.mxu0 0.0
    %715 = vmatpush.msra.mxu0 0.0
    %716 = vmatpush.msra.mxu0 0.0
    %717 = vmatpush.msra.mxu0 0.0
    %718 = vmatpush.msra.mxu0 0.0
    %719 = vmatpush.msra.mxu0 0.0
    %720 = vmatpush.msra.mxu0 0.0
    %721 = vmatpush.msra.mxu0 0.0
    %722 = vmatpush.msra.mxu0 0.0
    %723 = vmatpush.msra.mxu0 %v700
    %724 = vmatpush.msra.mxu0 %v698
    %725 = vmatmul.f32.gmra.mxu0 %v704
    %v726 = vpop.f32.mrf.mxu0
    %v727 = vadd.f32 0.0, %v726
    %728 = vmatmul.f32.gmra.mxu0 %v707
    %v729 = vpop.f32.mrf.mxu0
    %v730 = vadd.f32 0.0, %v729
    %731 = vdwg.mxu0
    %734 = vrot.lane.b32.xlu0 %v272, 64
    %v735 = vpop.permute.xlu0 %734
    %736 = vrot.lane.b32.xlu0 %v273, 64
    %v737 = vpop.permute.xlu0 %736
    %v741 = vsel %vm428, %v605, 0
    %v744 = vsel %vm428, %v620, 0
    %746 = vmatpush.msra.mxu0 0.0
    %747 = vmatpush.msra.mxu0 0.0
    %748 = vmatpush.msra.mxu0 0.0
    %749 = vmatpush.msra.mxu0 0.0
    %750 = vmatpush.msra.mxu0 0.0
    %751 = vmatpush.msra.mxu0 0.0
    %752 = vmatpush.msra.mxu0 0.0
    %753 = vmatpush.msra.mxu0 0.0
    %754 = vmatpush.msra.mxu0 0.0
    %755 = vmatpush.msra.mxu0 0.0
    %756 = vmatpush.msra.mxu0 0.0
    %757 = vmatpush.msra.mxu0 0.0
    %758 = vmatpush.msra.mxu0 0.0
    %759 = vmatpush.msra.mxu0 0.0
    %760 = vmatpush.msra.mxu0 %v737
    %761 = vmatpush.msra.mxu0 %v735
    %762 = vmatmul.f32.gmra.mxu0 %v741
    %v763 = vpop.f32.mrf.mxu0
    %v764 = vadd.f32 0.0, %v763
    %765 = vmatmul.f32.gmra.mxu0 %v744
    %v766 = vpop.f32.mrf.mxu0
    %v767 = vadd.f32 0.0, %v766
    %768 = vdwg.mxu0
    %v769 = vsel %vm124, %v653, 0.0
    %v770 = vsel %vm124, %v690, 0.0
    %v771 = vadd.f32 %v769, %v770
    %v772 = vsel %vm124, %v727, 0.0
    %v773 = vadd.f32 %v771, %v772
    %v774 = vsel %vm124, %v764, 0.0
    %v775 = vadd.f32 %v773, %v774
    %v776 = vsel %vm124, %v656, 0.0
    %v777 = vsel %vm124, %v693, 0.0
    %v778 = vadd.f32 %v776, %v777
    %v779 = vsel %vm124, %v730, 0.0
    %v780 = vadd.f32 %v778, %v779
    %v781 = vsel %vm124, %v767, 0.0
    %v782 = vadd.f32 %v780, %v781
    %v783 = vperm.slane %v81, 3
    %v785 = vsel %vm124, %v775, 0
    %v788 = vsel %vm124, %v782, 0
    %790 = vmatpush.msra.mxu0 0.0
    %791 = vmatpush.msra.mxu0 0.0
    %792 = vmatpush.msra.mxu0 0.0
    %793 = vmatpush.msra.mxu0 0.0
    %794 = vmatpush.msra.mxu0 0.0
    %795 = vmatpush.msra.mxu0 0.0
    %796 = vmatpush.msra.mxu0 0.0
    %797 = vmatpush.msra.mxu0 0.0
    %798 = vmatpush.msra.mxu0 0.0
    %799 = vmatpush.msra.mxu0 0.0
    %800 = vmatpush.msra.mxu0 0.0
    %801 = vmatpush.msra.mxu0 0.0
    %802 = vmatpush.msra.mxu0 %v107
    %803 = vmatpush.msra.mxu0 %v104
    %804 = vmatpush.msra.mxu0 %v101
    %805 = vmatpush.msra.mxu0 %v98
    %806 = vmatmul.f32.gmra.mxu0 %v785
    %v807 = vpop.f32.mrf.mxu0
    %v808 = vadd.f32 %v783, %v807
    %809 = vmatmul.f32.gmra.mxu0 %v788
    %v810 = vpop.f32.mrf.mxu0
    %v811 = vadd.f32 %v783, %v810
    %812 = vdwg.mxu0
    %v813 = vperm.slane %v81, 4
    %v814 = vmul.f32 %v174, %v813
    %v815 = vmul.f32 %v175, %v813
    %v816 = vperm.slane %v81, 5
    %v817 = vadd.f32 %v814, %v816
    %v818 = vadd.f32 %v815, %v816
    %v819 = vperm.slane %v81, 6
    %v821 = vsel %vm124, %v817, 0
    %v824 = vsel %vm124, %v818, 0
    %826 = vmatpush.msra.mxu0 0.0
    %827 = vmatpush.msra.mxu0 0.0
    %828 = vmatpush.msra.mxu0 0.0
    %829 = vmatpush.msra.mxu0 0.0
    %830 = vmatpush.msra.mxu0 0.0
    %831 = vmatpush.msra.mxu0 0.0
    %832 = vmatpush.msra.mxu0 0.0
    %833 = vmatpush.msra.mxu0 0.0
    %834 = vmatpush.msra.mxu0 0.0
    %835 = vmatpush.msra.mxu0 0.0
    %836 = vmatpush.msra.mxu0 0.0
    %837 = vmatpush.msra.mxu0 0.0
    %838 = vmatpush.msra.mxu0 %v106
    %839 = vmatpush.msra.mxu0 %v103
    %840 = vmatpush.msra.mxu0 %v100
    %841 = vmatpush.msra.mxu0 %v97
    %842 = vmatmul.f32.gmra.mxu0 %v821
    %v843 = vpop.f32.mrf.mxu0
    %v844 = vadd.f32 %v819, %v843
    %845 = vmatmul.f32.gmra.mxu0 %v824
    %v846 = vpop.f32.mrf.mxu0
    %v847 = vadd.f32 %v819, %v846
    %848 = vdwg.mxu0
    %v849 = vmul.f32 %v844, 0.5
    %v850 = vmul.f32 %v847, 0.5
    %v851 = vrcp.pop 1.4142135
    %v852 = vmul.f32 1.4142135, %v851
    %v853 = vsub.f32 1.0, %v852
    %v854 = vmul.f32 %v851, %v853
    %v855 = vadd.f32 %v851, %v854
    %vm856 = vweird.f32 %v851
    %v857 = vsel %vm856, %v851, %v855
    %v858 = vmul.f32 %v844, %v857
    %v859 = vmul.f32 %v847, %v857
    %v860 = vmul.f32 %v858, %v858
    %v861 = vmin.f32 16.0, %v860
    %v862 = vmul.f32 %v861, 2.1237322e-06
    %v863 = vadd.f32 %v862, 0.00028619796
    %v864 = vmul.f32 %v861, %v863
    %v865 = vadd.f32 %v864, 0.0036580483
    %v866 = vmul.f32 %v861, %v865
    %v867 = vadd.f32 %v866, 0.05243302
    %v868 = vmul.f32 %v861, %v867
    %v869 = vadd.f32 %v868, 0.18741608
    %v870 = vmul.f32 %v861, %v869
    %v871 = vadd.f32 %v870, 1.1283791
    %v872 = vmul.f32 %v858, %v871
    %v873 = vmul.f32 %v861, 3.8918573e-05
    %v874 = vadd.f32 %v873, 0.001143296
    %v875 = vmul.f32 %v861, %v874
    %v876 = vadd.f32 %v875, 0.014752088
    %v877 = vmul.f32 %v861, %v876
    %v878 = vadd.f32 %v877, 0.112945676
    %v879 = vmul.f32 %v861, %v878
    %v880 = vadd.f32 %v879, 0.4994258
    %v881 = vmul.f32 %v861, %v880
    %v882 = vadd.f32 %v881, 1.0
    %v883 = vrcp.pop %v882
    %v884 = vmul.f32 %v882, %v883
    %v885 = vsub.f32 1.0, %v884
    %v886 = vmul.f32 %v883, %v885
    %v887 = vadd.f32 %v883, %v886
    %vm888 = vweird.f32 %v882
    %vm889 = vweird.f32 %v883
    %vm890 = vmor %vm888, %vm889
    %v891 = vsel %vm890, %v883, %v887
    %v892 = vand.u32 2147483647, %v882
    %vm893 = vcmp.eq.f32.partialorder %v892, 8.507059e+37
    %v894 = vand.u32 %v882, 2147483648
    %v895 = vor.u32 1.1754944e-38, %v894
    %v896 = vsel %vm893, %v895, %v891
    %v897 = vmul.f32 %v872, %v896
    %v898 = vmin.f32 %v897, 1.0
    %v899 = vmax.f32 %v898, -1.0
    %v900 = vmul.f32 %v859, %v859
    %v901 = vmin.f32 16.0, %v900
    %v902 = vmul.f32 %v901, 2.1237322e-06
    %v903 = vadd.f32 %v902, 0.00028619796
    %v904 = vmul.f32 %v901, %v903
    %v905 = vadd.f32 %v904, 0.0036580483
    %v906 = vmul.f32 %v901, %v905
    %v907 = vadd.f32 %v906, 0.05243302
    %v908 = vmul.f32 %v901, %v907
    %v909 = vadd.f32 %v908, 0.18741608
    %v910 = vmul.f32 %v901, %v909
    %v911 = vadd.f32 %v910, 1.1283791
    %v912 = vmul.f32 %v859, %v911
    %v913 = vmul.f32 %v901, 3.8918573e-05
    %v914 = vadd.f32 %v913, 0.001143296
    %v915 = vmul.f32 %v901, %v914
    %v916 = vadd.f32 %v915, 0.014752088
    %v917 = vmul.f32 %v901, %v916
    %v918 = vadd.f32 %v917, 0.112945676
    %v919 = vmul.f32 %v901, %v918
    %v920 = vadd.f32 %v919, 0.4994258
    %v921 = vmul.f32 %v901, %v920
    %v922 = vadd.f32 %v921, 1.0
    %v923 = vrcp.pop %v922
    %v924 = vmul.f32 %v922, %v923
    %v925 = vsub.f32 1.0, %v924
    %v926 = vmul.f32 %v923, %v925
    %v927 = vadd.f32 %v923, %v926
    %vm928 = vweird.f32 %v922
    %vm929 = vweird.f32 %v923
    %vm930 = vmor %vm928, %vm929
    %v931 = vsel %vm930, %v923, %v927
    %v932 = vand.u32 2147483647, %v922
    %vm933 = vcmp.eq.f32.partialorder %v932, 8.507059e+37
    %v934 = vand.u32 %v922, 2147483648
    %v935 = vor.u32 1.1754944e-38, %v934
    %v936 = vsel %vm933, %v935, %v931
    %v937 = vmul.f32 %v912, %v936
    %v938 = vmin.f32 %v937, 1.0
    %v939 = vmax.f32 %v938, -1.0
    %v940 = vadd.f32 %v899, 1.0
    %v941 = vadd.f32 %v939, 1.0
    %v942 = vmul.f32 %v849, %v940
    %v943 = vmul.f32 %v850, %v941
    %v944 = vperm.slane %v81, 7
    %945 = vmatpush.msra.mxu0 %v123
    %946 = vmatpush.msra.mxu0 %v122
    %947 = vmatpush.msra.mxu0 %v121
    %948 = vmatpush.msra.mxu0 %v120
    %949 = vmatpush.msra.mxu0 %v119
    %950 = vmatpush.msra.mxu0 %v118
    %951 = vmatpush.msra.mxu0 %v117
    %952 = vmatpush.msra.mxu0 %v116
    %953 = vmatpush.msra.mxu0 %v115
    %954 = vmatpush.msra.mxu0 %v114
    %955 = vmatpush.msra.mxu0 %v113
    %956 = vmatpush.msra.mxu0 %v112
    %957 = vmatpush.msra.mxu0 %v111
    %958 = vmatpush.msra.mxu0 %v110
    %959 = vmatpush.msra.mxu0 %v109
    %960 = vmatpush.msra.mxu0 %v108
    %961 = vmatmul.f32.gmra.mxu0 %v942
    %v962 = vpop.f32.mrf.mxu0
    %v963 = vadd.f32 %v944, %v962
    %964 = vmatmul.f32.gmra.mxu0 %v943
    %v965 = vpop.f32.mrf.mxu0
    %v966 = vadd.f32 %v944, %v965
    %967 = vdwg.mxu0
    %v968 = vadd.f32 %v808, %v963
    %v969 = vadd.f32 %v811, %v966
    %v970 = vadd.f32 %v968, %v71
    %v971 = vadd.f32 %v969, %v72
    %s972 = scalar_lea.vmem %s3, 96
    %v973 = vld [vmem:[%s972] sm:$0xff]
    %v974 = vld [vmem:[%s972 + $0x8] sm:$0xff]
    %v975 = vld [vmem:[%s972 + $0x10] sm:$0xff]
    %v976 = vld [vmem:[%s972 + $0x18] sm:$0xff]
    %v977 = vld [vmem:[%s972 + $0x20] sm:$0xff]
    %v978 = vld [vmem:[%s972 + $0x28] sm:$0xff]
    %v979 = vld [vmem:[%s972 + $0x30] sm:$0xff]
    %v980 = vld [vmem:[%s972 + $0x38] sm:$0xff]
    %v981 = vld [vmem:[%s972 + $0x40] sm:$0xff]
    %v982 = vld [vmem:[%s972 + $0x48] sm:$0xff]
    %v983 = vld [vmem:[%s972 + $0x50] sm:$0xff]
    %v984 = vld [vmem:[%s972 + $0x58] sm:$0xff]
    %s985 = scalar_lea.vmem %s4, 128
    %v986 = vld [vmem:[%s985] sm:$0xff]
    %v987 = vld [vmem:[%s985 + $0x8] sm:$0xff]
    %v988 = vld [vmem:[%s985 + $0x10] sm:$0xff]
    %v989 = vld [vmem:[%s985 + $0x18] sm:$0xff]
    %v990 = vld [vmem:[%s985 + $0x20] sm:$0xff]
    %v991 = vld [vmem:[%s985 + $0x28] sm:$0xff]
    %v992 = vld [vmem:[%s985 + $0x30] sm:$0xff]
    %v993 = vld [vmem:[%s985 + $0x38] sm:$0xff]
    %v994 = vld [vmem:[%s985 + $0x40] sm:$0xff]
    %v995 = vld [vmem:[%s985 + $0x48] sm:$0xff]
    %v996 = vld [vmem:[%s985 + $0x50] sm:$0xff]
    %v997 = vld [vmem:[%s985 + $0x58] sm:$0xff]
    %v998 = vld [vmem:[%s985 + $0x60] sm:$0xff]
    %v999 = vld [vmem:[%s985 + $0x68] sm:$0xff]
    %v1000 = vld [vmem:[%s985 + $0x70] sm:$0xff]
    %v1001 = vld [vmem:[%s985 + $0x78] sm:$0xff]
    %v1002 = vsel %vm124, %v970, 0.0
    %1003 = vadd.xlane.f32.xlu0 %v1002
    %v1004 = vpop.xlane.xlu0 %1003
    %v1005 = vsel %vm124, %v971, 0.0
    %1006 = vadd.xlane.f32.xlu0 %v1005
    %v1007 = vpop.xlane.xlu0 %1006
    %v1008 = vmul.f32 %v1004, %v137
    %v1009 = vmul.f32 %v1007, %v137
    %v1010 = vsub.f32 %v970, %v1008
    %v1011 = vsub.f32 %v971, %v1009
    %v1012 = vmul.f32 %v1010, %v1010
    %v1013 = vmul.f32 %v1011, %v1011
    %v1014 = vsel %vm124, %v1012, 0.0
    %1015 = vadd.xlane.f32.xlu0 %v1014
    %v1016 = vpop.xlane.xlu0 %1015
    %v1017 = vsel %vm124, %v1013, 0.0
    %1018 = vadd.xlane.f32.xlu0 %v1017
    %v1019 = vpop.xlane.xlu0 %1018
    %v1020 = vmul.f32 %v1016, %v137
    %v1021 = vmul.f32 %v1019, %v137
    %v1022 = vadd.f32 %v1020, 1e-05
    %v1023 = vadd.f32 %v1021, 1e-05
    %v1024 = vrsqrt.pop %v1022
    %v1025 = vmul.f32 %v1024, %v1022
    %v1026 = vmul.f32 %v1025, %v1024
    %v1027 = vmul.f32 0.5, %v1026
    %v1028 = vsub.f32 1.5, %v1027
    %v1029 = vmul.f32 %v1024, %v1028
    %vm1030 = vweird.f32 %v1022
    %vm1031 = vweird.f32 %v1024
    %vm1032 = vmor %vm1030, %vm1031
    %v1033 = vsel %vm1032, %v1024, %v1029
    %v1034 = vrsqrt.pop %v1023
    %v1035 = vmul.f32 %v1034, %v1023
    %v1036 = vmul.f32 %v1035, %v1034
    %v1037 = vmul.f32 0.5, %v1036
    %v1038 = vsub.f32 1.5, %v1037
    %v1039 = vmul.f32 %v1034, %v1038
    %vm1040 = vweird.f32 %v1023
    %vm1041 = vweird.f32 %v1034
    %vm1042 = vmor %vm1040, %vm1041
    %v1043 = vsel %vm1042, %v1034, %v1039
    %v1044 = vmul.f32 %v1010, %v1033
    %v1045 = vmul.f32 %v1011, %v1043
    %v1046 = vperm.slane %v82, 0
    %v1047 = vmul.f32 %v1044, %v1046
    %v1048 = vmul.f32 %v1045, %v1046
    %v1049 = vperm.slane %v82, 1
    %v1050 = vadd.f32 %v1047, %v1049
    %v1051 = vadd.f32 %v1048, %v1049
    %v1052 = vperm.slane %v82, 2
    %v1054 = vsel %vm124, %v1050, 0
    %v1057 = vsel %vm124, %v1051, 0
    %1059 = vmatpush.msra.mxu0 0.0
    %1060 = vmatpush.msra.mxu0 0.0
    %1061 = vmatpush.msra.mxu0 0.0
    %1062 = vmatpush.msra.mxu0 0.0
    %1063 = vmatpush.msra.mxu0 0.0
    %1064 = vmatpush.msra.mxu0 0.0
    %1065 = vmatpush.msra.mxu0 0.0
    %1066 = vmatpush.msra.mxu0 0.0
    %1067 = vmatpush.msra.mxu0 0.0
    %1068 = vmatpush.msra.mxu0 0.0
    %1069 = vmatpush.msra.mxu0 0.0
    %1070 = vmatpush.msra.mxu0 0.0
    %1071 = vmatpush.msra.mxu0 %v982
    %1072 = vmatpush.msra.mxu0 %v979
    %1073 = vmatpush.msra.mxu0 %v976
    %1074 = vmatpush.msra.mxu0 %v973
    %1075 = vmatmul.f32.gmra.mxu0 %v1054
    %v1076 = vpop.f32.mrf.mxu0
    %v1077 = vadd.f32 %v1052, %v1076
    %1078 = vmatmul.f32.gmra.mxu0 %v1057
    %v1079 = vpop.f32.mrf.mxu0
    %v1080 = vadd.f32 %v1052, %v1079
    %1081 = vdwg.mxu0
    %v1082 = vmul.f32 %v1077, %v73
    %v1083 = vmul.f32 %v1080, %v74
    %1084 = vrot.lane.b32.xlu0 %v1077, 127
    %v1085 = vpop.permute.xlu0 %1084
    %1086 = vrot.lane.b32.xlu0 %v1080, 127
    %v1087 = vpop.permute.xlu0 %1086
    %v1088 = vmul.f32 %v1085, %v76
    %v1089 = vmul.f32 %v1087, %v77
    %v1090 = vadd.f32 %v1082, %v1088
    %v1091 = vadd.f32 %v1083, %v1089
    %1092 = vrot.lane.b32.xlu0 %v1077, 1
    %v1093 = vpop.permute.xlu0 %1092
    %1094 = vrot.lane.b32.xlu0 %v1080, 1
    %v1095 = vpop.permute.xlu0 %1094
    %v1096 = vmul.f32 %v1093, %v79
    %v1097 = vmul.f32 %v1095, %v80
    %v1098 = vadd.f32 %v1090, %v1096
    %v1099 = vadd.f32 %v1091, %v1097
    %v1100 = vmul.f32 %v1098, %v235
    %v1101 = vmul.f32 %v1099, %v235
    %v1102 = vmul.f32 %v1098, %v237
    %v1103 = vmul.f32 %v1099, %v237
    %v1104 = vmul.f32 %v1098, %v239
    %v1105 = vmul.f32 %v1099, %v239
    %v1106 = vmul.f32 %v1098, %v241
    %v1107 = vmul.f32 %v1099, %v241
    %v1108 = vmul.f32 %v1098, %v255
    %v1109 = vmul.f32 %v1099, %v255
    %v1110 = vmul.f32 %v1098, %v257
    %v1111 = vmul.f32 %v1099, %v257
    %v1112 = vmul.f32 %v1098, %v259
    %v1113 = vmul.f32 %v1099, %v259
    %v1114 = vmul.f32 %v1098, %v261
    %v1115 = vmul.f32 %v1099, %v261
    %1118 = vrot.lane.b32.xlu0 %v1100, 96
    %v1119 = vpop.permute.xlu0 %1118
    %1120 = vrot.lane.b32.xlu0 %v1101, 96
    %v1121 = vpop.permute.xlu0 %1120
    %v1123 = vsel %vm124, %v1098, 0
    %v1126 = vsel %vm124, %v1099, 0
    %v1128 = vsel %vm124, %v1119, 0
    %v1130 = vsel %vm124, %v1121, 0
    %1132 = vmatpush.xpose.msra.mxu0 0.0
    %1133 = vmatpush.xpose.msra.mxu0 0.0
    %1134 = vmatpush.xpose.msra.mxu0 0.0
    %1135 = vmatpush.xpose.msra.mxu0 0.0
    %1136 = vmatpush.xpose.msra.mxu0 0.0
    %1137 = vmatpush.xpose.msra.mxu0 0.0
    %1138 = vmatpush.xpose.msra.mxu0 0.0
    %1139 = vmatpush.xpose.msra.mxu0 0.0
    %1140 = vmatpush.xpose.msra.mxu0 0.0
    %1141 = vmatpush.xpose.msra.mxu0 0.0
    %1142 = vmatpush.xpose.msra.mxu0 0.0
    %1143 = vmatpush.xpose.msra.mxu0 0.0
    %1144 = vmatpush.xpose.msra.mxu0 0.0
    %1145 = vmatpush.xpose.msra.mxu0 0.0
    %1146 = vmatpush.xpose.msra.mxu0 %v1130
    %1147 = vmatpush.xpose.msra.mxu0 %v1128
    %1148 = vmatmul.f32.gmra.mxu0 %v1123
    %v1149 = vpop.f32.mrf.mxu0
    %v1150 = vadd.f32 0.0, %v1149
    %1151 = vmatmul.f32.gmra.mxu0 %v1126
    %v1152 = vpop.f32.mrf.mxu0
    %v1153 = vadd.f32 0.0, %v1152
    %1154 = vdwg.mxu0
    %1157 = vrot.lane.b32.xlu0 %v1102, 96
    %v1158 = vpop.permute.xlu0 %1157
    %1159 = vrot.lane.b32.xlu0 %v1103, 96
    %v1160 = vpop.permute.xlu0 %1159
    %v1161 = vsel %vm124, %v1158, 0
    %v1163 = vsel %vm124, %v1160, 0
    %1165 = vmatpush.xpose.msra.mxu0 0.0
    %1166 = vmatpush.xpose.msra.mxu0 0.0
    %1167 = vmatpush.xpose.msra.mxu0 0.0
    %1168 = vmatpush.xpose.msra.mxu0 0.0
    %1169 = vmatpush.xpose.msra.mxu0 0.0
    %1170 = vmatpush.xpose.msra.mxu0 0.0
    %1171 = vmatpush.xpose.msra.mxu0 0.0
    %1172 = vmatpush.xpose.msra.mxu0 0.0
    %1173 = vmatpush.xpose.msra.mxu0 0.0
    %1174 = vmatpush.xpose.msra.mxu0 0.0
    %1175 = vmatpush.xpose.msra.mxu0 0.0
    %1176 = vmatpush.xpose.msra.mxu0 0.0
    %1177 = vmatpush.xpose.msra.mxu0 0.0
    %1178 = vmatpush.xpose.msra.mxu0 0.0
    %1179 = vmatpush.xpose.msra.mxu0 %v1163
    %1180 = vmatpush.xpose.msra.mxu0 %v1161
    %1181 = vmatmul.f32.gmra.mxu0 %v1123
    %v1182 = vpop.f32.mrf.mxu0
    %v1183 = vadd.f32 0.0, %v1182
    %1184 = vmatmul.f32.gmra.mxu0 %v1126
    %v1185 = vpop.f32.mrf.mxu0
    %v1186 = vadd.f32 0.0, %v1185
    %1187 = vdwg.mxu0
    %1190 = vrot.lane.b32.xlu0 %v1104, 96
    %v1191 = vpop.permute.xlu0 %1190
    %1192 = vrot.lane.b32.xlu0 %v1105, 96
    %v1193 = vpop.permute.xlu0 %1192
    %v1194 = vsel %vm124, %v1191, 0
    %v1196 = vsel %vm124, %v1193, 0
    %1198 = vmatpush.xpose.msra.mxu0 0.0
    %1199 = vmatpush.xpose.msra.mxu0 0.0
    %1200 = vmatpush.xpose.msra.mxu0 0.0
    %1201 = vmatpush.xpose.msra.mxu0 0.0
    %1202 = vmatpush.xpose.msra.mxu0 0.0
    %1203 = vmatpush.xpose.msra.mxu0 0.0
    %1204 = vmatpush.xpose.msra.mxu0 0.0
    %1205 = vmatpush.xpose.msra.mxu0 0.0
    %1206 = vmatpush.xpose.msra.mxu0 0.0
    %1207 = vmatpush.xpose.msra.mxu0 0.0
    %1208 = vmatpush.xpose.msra.mxu0 0.0
    %1209 = vmatpush.xpose.msra.mxu0 0.0
    %1210 = vmatpush.xpose.msra.mxu0 0.0
    %1211 = vmatpush.xpose.msra.mxu0 0.0
    %1212 = vmatpush.xpose.msra.mxu0 %v1196
    %1213 = vmatpush.xpose.msra.mxu0 %v1194
    %1214 = vmatmul.f32.gmra.mxu0 %v1123
    %v1215 = vpop.f32.mrf.mxu0
    %v1216 = vadd.f32 0.0, %v1215
    %1217 = vmatmul.f32.gmra.mxu0 %v1126
    %v1218 = vpop.f32.mrf.mxu0
    %v1219 = vadd.f32 0.0, %v1218
    %1220 = vdwg.mxu0
    %1223 = vrot.lane.b32.xlu0 %v1106, 96
    %v1224 = vpop.permute.xlu0 %1223
    %1225 = vrot.lane.b32.xlu0 %v1107, 96
    %v1226 = vpop.permute.xlu0 %1225
    %v1227 = vsel %vm124, %v1224, 0
    %v1229 = vsel %vm124, %v1226, 0
    %1231 = vmatpush.xpose.msra.mxu0 0.0
    %1232 = vmatpush.xpose.msra.mxu0 0.0
    %1233 = vmatpush.xpose.msra.mxu0 0.0
    %1234 = vmatpush.xpose.msra.mxu0 0.0
    %1235 = vmatpush.xpose.msra.mxu0 0.0
    %1236 = vmatpush.xpose.msra.mxu0 0.0
    %1237 = vmatpush.xpose.msra.mxu0 0.0
    %1238 = vmatpush.xpose.msra.mxu0 0.0
    %1239 = vmatpush.xpose.msra.mxu0 0.0
    %1240 = vmatpush.xpose.msra.mxu0 0.0
    %1241 = vmatpush.xpose.msra.mxu0 0.0
    %1242 = vmatpush.xpose.msra.mxu0 0.0
    %1243 = vmatpush.xpose.msra.mxu0 0.0
    %1244 = vmatpush.xpose.msra.mxu0 0.0
    %1245 = vmatpush.xpose.msra.mxu0 %v1229
    %1246 = vmatpush.xpose.msra.mxu0 %v1227
    %1247 = vmatmul.f32.gmra.mxu0 %v1123
    %v1248 = vpop.f32.mrf.mxu0
    %v1249 = vadd.f32 0.0, %v1248
    %1250 = vmatmul.f32.gmra.mxu0 %v1126
    %v1251 = vpop.f32.mrf.mxu0
    %v1252 = vadd.f32 0.0, %v1251
    %1253 = vdwg.mxu0
    %v1254 = vmul.f32 %v1150, 0.35355338
    %v1255 = vmul.f32 %v1153, 0.35355338
    %v1256 = vmul.f32 %v1183, 0.35355338
    %v1257 = vmul.f32 %v1186, 0.35355338
    %v1258 = vmul.f32 %v1216, 0.35355338
    %v1259 = vmul.f32 %v1219, 0.35355338
    %v1260 = vmul.f32 %v1249, 0.35355338
    %v1261 = vmul.f32 %v1252, 0.35355338
    %v1262 = vadd.f32 %v1254, %v84
    %v1263 = vadd.f32 %v1255, %v85
    %v1264 = vadd.f32 %v1256, %v84
    %v1265 = vadd.f32 %v1257, %v85
    %v1266 = vadd.f32 %v1258, %v84
    %v1267 = vadd.f32 %v1259, %v85
    %v1268 = vadd.f32 %v1260, %v84
    %v1269 = vadd.f32 %v1261, %v85
    %v1270 = vsel %vm428, %v1262, -inf
    %1271 = vmax.xlane.f32.xlu0 %v1270
    %v1272 = vpop.xlane.xlu0 %1271
    %v1273 = vsel %vm428, %v1263, -inf
    %1274 = vmax.xlane.f32.xlu0 %v1273
    %v1275 = vpop.xlane.xlu0 %1274
    %v1276 = vsel %vm428, %v1264, -inf
    %1277 = vmax.xlane.f32.xlu0 %v1276
    %v1278 = vpop.xlane.xlu0 %1277
    %v1279 = vsel %vm428, %v1265, -inf
    %1280 = vmax.xlane.f32.xlu0 %v1279
    %v1281 = vpop.xlane.xlu0 %1280
    %v1282 = vsel %vm428, %v1266, -inf
    %1283 = vmax.xlane.f32.xlu0 %v1282
    %v1284 = vpop.xlane.xlu0 %1283
    %v1285 = vsel %vm428, %v1267, -inf
    %1286 = vmax.xlane.f32.xlu0 %v1285
    %v1287 = vpop.xlane.xlu0 %1286
    %v1288 = vsel %vm428, %v1268, -inf
    %1289 = vmax.xlane.f32.xlu0 %v1288
    %v1290 = vpop.xlane.xlu0 %1289
    %v1291 = vsel %vm428, %v1269, -inf
    %1292 = vmax.xlane.f32.xlu0 %v1291
    %v1293 = vpop.xlane.xlu0 %1292
    %v1294 = vsub.f32 %v1262, %v1272
    %v1295 = vsub.f32 %v1263, %v1275
    %v1296 = vsub.f32 %v1264, %v1278
    %v1297 = vsub.f32 %v1265, %v1281
    %v1298 = vsub.f32 %v1266, %v1284
    %v1299 = vsub.f32 %v1267, %v1287
    %v1300 = vsub.f32 %v1268, %v1290
    %v1301 = vsub.f32 %v1269, %v1293
    %v1302 = vmul.f32 %v1294, 1.442695
    %v1303 = vpow.pop %v1302
    %v1304 = vmul.f32 %v1295, 1.442695
    %v1305 = vpow.pop %v1304
    %v1306 = vmul.f32 %v1296, 1.442695
    %v1307 = vpow.pop %v1306
    %v1308 = vmul.f32 %v1297, 1.442695
    %v1309 = vpow.pop %v1308
    %v1310 = vmul.f32 %v1298, 1.442695
    %v1311 = vpow.pop %v1310
    %v1312 = vmul.f32 %v1299, 1.442695
    %v1313 = vpow.pop %v1312
    %v1314 = vmul.f32 %v1300, 1.442695
    %v1315 = vpow.pop %v1314
    %v1316 = vmul.f32 %v1301, 1.442695
    %v1317 = vpow.pop %v1316
    %v1318 = vsel %vm428, %v1303, 0.0
    %1319 = vadd.xlane.f32.xlu0 %v1318
    %v1320 = vpop.xlane.xlu0 %1319
    %v1321 = vsel %vm428, %v1305, 0.0
    %1322 = vadd.xlane.f32.xlu0 %v1321
    %v1323 = vpop.xlane.xlu0 %1322
    %v1324 = vsel %vm428, %v1307, 0.0
    %1325 = vadd.xlane.f32.xlu0 %v1324
    %v1326 = vpop.xlane.xlu0 %1325
    %v1327 = vsel %vm428, %v1309, 0.0
    %1328 = vadd.xlane.f32.xlu0 %v1327
    %v1329 = vpop.xlane.xlu0 %1328
    %v1330 = vsel %vm428, %v1311, 0.0
    %1331 = vadd.xlane.f32.xlu0 %v1330
    %v1332 = vpop.xlane.xlu0 %1331
    %v1333 = vsel %vm428, %v1313, 0.0
    %1334 = vadd.xlane.f32.xlu0 %v1333
    %v1335 = vpop.xlane.xlu0 %1334
    %v1336 = vsel %vm428, %v1315, 0.0
    %1337 = vadd.xlane.f32.xlu0 %v1336
    %v1338 = vpop.xlane.xlu0 %1337
    %v1339 = vsel %vm428, %v1317, 0.0
    %1340 = vadd.xlane.f32.xlu0 %v1339
    %v1341 = vpop.xlane.xlu0 %1340
    %v1342 = vrcp.pop %v1320
    %v1343 = vmul.f32 %v1320, %v1342
    %v1344 = vsub.f32 1.0, %v1343
    %v1345 = vmul.f32 %v1342, %v1344
    %v1346 = vadd.f32 %v1342, %v1345
    %vm1347 = vweird.f32 %v1320
    %vm1348 = vweird.f32 %v1342
    %vm1349 = vmor %vm1347, %vm1348
    %v1350 = vsel %vm1349, %v1342, %v1346
    %v1351 = vand.u32 2147483647, %v1320
    %vm1352 = vcmp.eq.f32.partialorder %v1351, 8.507059e+37
    %v1353 = vand.u32 %v1320, 2147483648
    %v1354 = vor.u32 1.1754944e-38, %v1353
    %v1355 = vsel %vm1352, %v1354, %v1350
    %v1356 = vmul.f32 %v1303, %v1355
    %v1357 = vrcp.pop %v1323
    %v1358 = vmul.f32 %v1323, %v1357
    %v1359 = vsub.f32 1.0, %v1358
    %v1360 = vmul.f32 %v1357, %v1359
    %v1361 = vadd.f32 %v1357, %v1360
    %vm1362 = vweird.f32 %v1323
    %vm1363 = vweird.f32 %v1357
    %vm1364 = vmor %vm1362, %vm1363
    %v1365 = vsel %vm1364, %v1357, %v1361
    %v1366 = vand.u32 2147483647, %v1323
    %vm1367 = vcmp.eq.f32.partialorder %v1366, 8.507059e+37
    %v1368 = vand.u32 %v1323, 2147483648
    %v1369 = vor.u32 1.1754944e-38, %v1368
    %v1370 = vsel %vm1367, %v1369, %v1365
    %v1371 = vmul.f32 %v1305, %v1370
    %v1372 = vrcp.pop %v1326
    %v1373 = vmul.f32 %v1326, %v1372
    %v1374 = vsub.f32 1.0, %v1373
    %v1375 = vmul.f32 %v1372, %v1374
    %v1376 = vadd.f32 %v1372, %v1375
    %vm1377 = vweird.f32 %v1326
    %vm1378 = vweird.f32 %v1372
    %vm1379 = vmor %vm1377, %vm1378
    %v1380 = vsel %vm1379, %v1372, %v1376
    %v1381 = vand.u32 2147483647, %v1326
    %vm1382 = vcmp.eq.f32.partialorder %v1381, 8.507059e+37
    %v1383 = vand.u32 %v1326, 2147483648
    %v1384 = vor.u32 1.1754944e-38, %v1383
    %v1385 = vsel %vm1382, %v1384, %v1380
    %v1386 = vmul.f32 %v1307, %v1385
    %v1387 = vrcp.pop %v1329
    %v1388 = vmul.f32 %v1329, %v1387
    %v1389 = vsub.f32 1.0, %v1388
    %v1390 = vmul.f32 %v1387, %v1389
    %v1391 = vadd.f32 %v1387, %v1390
    %vm1392 = vweird.f32 %v1329
    %vm1393 = vweird.f32 %v1387
    %vm1394 = vmor %vm1392, %vm1393
    %v1395 = vsel %vm1394, %v1387, %v1391
    %v1396 = vand.u32 2147483647, %v1329
    %vm1397 = vcmp.eq.f32.partialorder %v1396, 8.507059e+37
    %v1398 = vand.u32 %v1329, 2147483648
    %v1399 = vor.u32 1.1754944e-38, %v1398
    %v1400 = vsel %vm1397, %v1399, %v1395
    %v1401 = vmul.f32 %v1309, %v1400
    %v1402 = vrcp.pop %v1332
    %v1403 = vmul.f32 %v1332, %v1402
    %v1404 = vsub.f32 1.0, %v1403
    %v1405 = vmul.f32 %v1402, %v1404
    %v1406 = vadd.f32 %v1402, %v1405
    %vm1407 = vweird.f32 %v1332
    %vm1408 = vweird.f32 %v1402
    %vm1409 = vmor %vm1407, %vm1408
    %v1410 = vsel %vm1409, %v1402, %v1406
    %v1411 = vand.u32 2147483647, %v1332
    %vm1412 = vcmp.eq.f32.partialorder %v1411, 8.507059e+37
    %v1413 = vand.u32 %v1332, 2147483648
    %v1414 = vor.u32 1.1754944e-38, %v1413
    %v1415 = vsel %vm1412, %v1414, %v1410
    %v1416 = vmul.f32 %v1311, %v1415
    %v1417 = vrcp.pop %v1335
    %v1418 = vmul.f32 %v1335, %v1417
    %v1419 = vsub.f32 1.0, %v1418
    %v1420 = vmul.f32 %v1417, %v1419
    %v1421 = vadd.f32 %v1417, %v1420
    %vm1422 = vweird.f32 %v1335
    %vm1423 = vweird.f32 %v1417
    %vm1424 = vmor %vm1422, %vm1423
    %v1425 = vsel %vm1424, %v1417, %v1421
    %v1426 = vand.u32 2147483647, %v1335
    %vm1427 = vcmp.eq.f32.partialorder %v1426, 8.507059e+37
    %v1428 = vand.u32 %v1335, 2147483648
    %v1429 = vor.u32 1.1754944e-38, %v1428
    %v1430 = vsel %vm1427, %v1429, %v1425
    %v1431 = vmul.f32 %v1313, %v1430
    %v1432 = vrcp.pop %v1338
    %v1433 = vmul.f32 %v1338, %v1432
    %v1434 = vsub.f32 1.0, %v1433
    %v1435 = vmul.f32 %v1432, %v1434
    %v1436 = vadd.f32 %v1432, %v1435
    %vm1437 = vweird.f32 %v1338
    %vm1438 = vweird.f32 %v1432
    %vm1439 = vmor %vm1437, %vm1438
    %v1440 = vsel %vm1439, %v1432, %v1436
    %v1441 = vand.u32 2147483647, %v1338
    %vm1442 = vcmp.eq.f32.partialorder %v1441, 8.507059e+37
    %v1443 = vand.u32 %v1338, 2147483648
    %v1444 = vor.u32 1.1754944e-38, %v1443
    %v1445 = vsel %vm1442, %v1444, %v1440
    %v1446 = vmul.f32 %v1315, %v1445
    %v1447 = vrcp.pop %v1341
    %v1448 = vmul.f32 %v1341, %v1447
    %v1449 = vsub.f32 1.0, %v1448
    %v1450 = vmul.f32 %v1447, %v1449
    %v1451 = vadd.f32 %v1447, %v1450
    %vm1452 = vweird.f32 %v1341
    %vm1453 = vweird.f32 %v1447
    %vm1454 = vmor %vm1452, %vm1453
    %v1455 = vsel %vm1454, %v1447, %v1451
    %v1456 = vand.u32 2147483647, %v1341
    %vm1457 = vcmp.eq.f32.partialorder %v1456, 8.507059e+37
    %v1458 = vand.u32 %v1341, 2147483648
    %v1459 = vor.u32 1.1754944e-38, %v1458
    %v1460 = vsel %vm1457, %v1459, %v1455
    %v1461 = vmul.f32 %v1317, %v1460
    %1464 = vrot.lane.b32.xlu0 %v1108, 64
    %v1465 = vpop.permute.xlu0 %1464
    %1466 = vrot.lane.b32.xlu0 %v1109, 64
    %v1467 = vpop.permute.xlu0 %1466
    %v1471 = vsel %vm428, %v1356, 0
    %v1474 = vsel %vm428, %v1371, 0
    %1476 = vmatpush.msra.mxu0 0.0
    %1477 = vmatpush.msra.mxu0 0.0
    %1478 = vmatpush.msra.mxu0 0.0
    %1479 = vmatpush.msra.mxu0 0.0
    %1480 = vmatpush.msra.mxu0 0.0
    %1481 = vmatpush.msra.mxu0 0.0
    %1482 = vmatpush.msra.mxu0 0.0
    %1483 = vmatpush.msra.mxu0 0.0
    %1484 = vmatpush.msra.mxu0 0.0
    %1485 = vmatpush.msra.mxu0 0.0
    %1486 = vmatpush.msra.mxu0 0.0
    %1487 = vmatpush.msra.mxu0 0.0
    %1488 = vmatpush.msra.mxu0 0.0
    %1489 = vmatpush.msra.mxu0 0.0
    %1490 = vmatpush.msra.mxu0 %v1467
    %1491 = vmatpush.msra.mxu0 %v1465
    %1492 = vmatmul.f32.gmra.mxu0 %v1471
    %v1493 = vpop.f32.mrf.mxu0
    %v1494 = vadd.f32 0.0, %v1493
    %1495 = vmatmul.f32.gmra.mxu0 %v1474
    %v1496 = vpop.f32.mrf.mxu0
    %v1497 = vadd.f32 0.0, %v1496
    %1498 = vdwg.mxu0
    %1501 = vrot.lane.b32.xlu0 %v1110, 64
    %v1502 = vpop.permute.xlu0 %1501
    %1503 = vrot.lane.b32.xlu0 %v1111, 64
    %v1504 = vpop.permute.xlu0 %1503
    %v1508 = vsel %vm428, %v1386, 0
    %v1511 = vsel %vm428, %v1401, 0
    %1513 = vmatpush.msra.mxu0 0.0
    %1514 = vmatpush.msra.mxu0 0.0
    %1515 = vmatpush.msra.mxu0 0.0
    %1516 = vmatpush.msra.mxu0 0.0
    %1517 = vmatpush.msra.mxu0 0.0
    %1518 = vmatpush.msra.mxu0 0.0
    %1519 = vmatpush.msra.mxu0 0.0
    %1520 = vmatpush.msra.mxu0 0.0
    %1521 = vmatpush.msra.mxu0 0.0
    %1522 = vmatpush.msra.mxu0 0.0
    %1523 = vmatpush.msra.mxu0 0.0
    %1524 = vmatpush.msra.mxu0 0.0
    %1525 = vmatpush.msra.mxu0 0.0
    %1526 = vmatpush.msra.mxu0 0.0
    %1527 = vmatpush.msra.mxu0 %v1504
    %1528 = vmatpush.msra.mxu0 %v1502
    %1529 = vmatmul.f32.gmra.mxu0 %v1508
    %v1530 = vpop.f32.mrf.mxu0
    %v1531 = vadd.f32 0.0, %v1530
    %1532 = vmatmul.f32.gmra.mxu0 %v1511
    %v1533 = vpop.f32.mrf.mxu0
    %v1534 = vadd.f32 0.0, %v1533
    %1535 = vdwg.mxu0
    %1538 = vrot.lane.b32.xlu0 %v1112, 64
    %v1539 = vpop.permute.xlu0 %1538
    %1540 = vrot.lane.b32.xlu0 %v1113, 64
    %v1541 = vpop.permute.xlu0 %1540
    %v1545 = vsel %vm428, %v1416, 0
    %v1548 = vsel %vm428, %v1431, 0
    %1550 = vmatpush.msra.mxu0 0.0
    %1551 = vmatpush.msra.mxu0 0.0
    %1552 = vmatpush.msra.mxu0 0.0
    %1553 = vmatpush.msra.mxu0 0.0
    %1554 = vmatpush.msra.mxu0 0.0
    %1555 = vmatpush.msra.mxu0 0.0
    %1556 = vmatpush.msra.mxu0 0.0
    %1557 = vmatpush.msra.mxu0 0.0
    %1558 = vmatpush.msra.mxu0 0.0
    %1559 = vmatpush.msra.mxu0 0.0
    %1560 = vmatpush.msra.mxu0 0.0
    %1561 = vmatpush.msra.mxu0 0.0
    %1562 = vmatpush.msra.mxu0 0.0
    %1563 = vmatpush.msra.mxu0 0.0
    %1564 = vmatpush.msra.mxu0 %v1541
    %1565 = vmatpush.msra.mxu0 %v1539
    %1566 = vmatmul.f32.gmra.mxu0 %v1545
    %v1567 = vpop.f32.mrf.mxu0
    %v1568 = vadd.f32 0.0, %v1567
    %1569 = vmatmul.f32.gmra.mxu0 %v1548
    %v1570 = vpop.f32.mrf.mxu0
    %v1571 = vadd.f32 0.0, %v1570
    %1572 = vdwg.mxu0
    %1575 = vrot.lane.b32.xlu0 %v1114, 64
    %v1576 = vpop.permute.xlu0 %1575
    %1577 = vrot.lane.b32.xlu0 %v1115, 64
    %v1578 = vpop.permute.xlu0 %1577
    %v1582 = vsel %vm428, %v1446, 0
    %v1585 = vsel %vm428, %v1461, 0
    %1587 = vmatpush.msra.mxu0 0.0
    %1588 = vmatpush.msra.mxu0 0.0
    %1589 = vmatpush.msra.mxu0 0.0
    %1590 = vmatpush.msra.mxu0 0.0
    %1591 = vmatpush.msra.mxu0 0.0
    %1592 = vmatpush.msra.mxu0 0.0
    %1593 = vmatpush.msra.mxu0 0.0
    %1594 = vmatpush.msra.mxu0 0.0
    %1595 = vmatpush.msra.mxu0 0.0
    %1596 = vmatpush.msra.mxu0 0.0
    %1597 = vmatpush.msra.mxu0 0.0
    %1598 = vmatpush.msra.mxu0 0.0
    %1599 = vmatpush.msra.mxu0 0.0
    %1600 = vmatpush.msra.mxu0 0.0
    %1601 = vmatpush.msra.mxu0 %v1578
    %1602 = vmatpush.msra.mxu0 %v1576
    %1603 = vmatmul.f32.gmra.mxu0 %v1582
    %v1604 = vpop.f32.mrf.mxu0
    %v1605 = vadd.f32 0.0, %v1604
    %1606 = vmatmul.f32.gmra.mxu0 %v1585
    %v1607 = vpop.f32.mrf.mxu0
    %v1608 = vadd.f32 0.0, %v1607
    %1609 = vdwg.mxu0
    %v1610 = vsel %vm124, %v1494, 0.0
    %v1611 = vsel %vm124, %v1531, 0.0
    %v1612 = vadd.f32 %v1610, %v1611
    %v1613 = vsel %vm124, %v1568, 0.0
    %v1614 = vadd.f32 %v1612, %v1613
    %v1615 = vsel %vm124, %v1605, 0.0
    %v1616 = vadd.f32 %v1614, %v1615
    %v1617 = vsel %vm124, %v1497, 0.0
    %v1618 = vsel %vm124, %v1534, 0.0
    %v1619 = vadd.f32 %v1617, %v1618
    %v1620 = vsel %vm124, %v1571, 0.0
    %v1621 = vadd.f32 %v1619, %v1620
    %v1622 = vsel %vm124, %v1608, 0.0
    %v1623 = vadd.f32 %v1621, %v1622
    %v1624 = vperm.slane %v82, 3
    %v1626 = vsel %vm124, %v1616, 0
    %v1629 = vsel %vm124, %v1623, 0
    %1631 = vmatpush.msra.mxu0 0.0
    %1632 = vmatpush.msra.mxu0 0.0
    %1633 = vmatpush.msra.mxu0 0.0
    %1634 = vmatpush.msra.mxu0 0.0
    %1635 = vmatpush.msra.mxu0 0.0
    %1636 = vmatpush.msra.mxu0 0.0
    %1637 = vmatpush.msra.mxu0 0.0
    %1638 = vmatpush.msra.mxu0 0.0
    %1639 = vmatpush.msra.mxu0 0.0
    %1640 = vmatpush.msra.mxu0 0.0
    %1641 = vmatpush.msra.mxu0 0.0
    %1642 = vmatpush.msra.mxu0 0.0
    %1643 = vmatpush.msra.mxu0 %v984
    %1644 = vmatpush.msra.mxu0 %v981
    %1645 = vmatpush.msra.mxu0 %v978
    %1646 = vmatpush.msra.mxu0 %v975
    %1647 = vmatmul.f32.gmra.mxu0 %v1626
    %v1648 = vpop.f32.mrf.mxu0
    %v1649 = vadd.f32 %v1624, %v1648
    %1650 = vmatmul.f32.gmra.mxu0 %v1629
    %v1651 = vpop.f32.mrf.mxu0
    %v1652 = vadd.f32 %v1624, %v1651
    %1653 = vdwg.mxu0
    %v1654 = vperm.slane %v82, 4
    %v1655 = vmul.f32 %v1044, %v1654
    %v1656 = vmul.f32 %v1045, %v1654
    %v1657 = vperm.slane %v82, 5
    %v1658 = vadd.f32 %v1655, %v1657
    %v1659 = vadd.f32 %v1656, %v1657
    %v1660 = vperm.slane %v82, 6
    %v1662 = vsel %vm124, %v1658, 0
    %v1665 = vsel %vm124, %v1659, 0
    %1667 = vmatpush.msra.mxu0 0.0
    %1668 = vmatpush.msra.mxu0 0.0
    %1669 = vmatpush.msra.mxu0 0.0
    %1670 = vmatpush.msra.mxu0 0.0
    %1671 = vmatpush.msra.mxu0 0.0
    %1672 = vmatpush.msra.mxu0 0.0
    %1673 = vmatpush.msra.mxu0 0.0
    %1674 = vmatpush.msra.mxu0 0.0
    %1675 = vmatpush.msra.mxu0 0.0
    %1676 = vmatpush.msra.mxu0 0.0
    %1677 = vmatpush.msra.mxu0 0.0
    %1678 = vmatpush.msra.mxu0 0.0
    %1679 = vmatpush.msra.mxu0 %v983
    %1680 = vmatpush.msra.mxu0 %v980
    %1681 = vmatpush.msra.mxu0 %v977
    %1682 = vmatpush.msra.mxu0 %v974
    %1683 = vmatmul.f32.gmra.mxu0 %v1662
    %v1684 = vpop.f32.mrf.mxu0
    %v1685 = vadd.f32 %v1660, %v1684
    %1686 = vmatmul.f32.gmra.mxu0 %v1665
    %v1687 = vpop.f32.mrf.mxu0
    %v1688 = vadd.f32 %v1660, %v1687
    %1689 = vdwg.mxu0
    %v1690 = vmul.f32 %v1685, 0.5
    %v1691 = vmul.f32 %v1688, 0.5
    %v1692 = vmul.f32 %v1685, %v857
    %v1693 = vmul.f32 %v1688, %v857
    %v1694 = vmul.f32 %v1692, %v1692
    %v1695 = vmin.f32 16.0, %v1694
    %v1696 = vmul.f32 %v1695, 2.1237322e-06
    %v1697 = vadd.f32 %v1696, 0.00028619796
    %v1698 = vmul.f32 %v1695, %v1697
    %v1699 = vadd.f32 %v1698, 0.0036580483
    %v1700 = vmul.f32 %v1695, %v1699
    %v1701 = vadd.f32 %v1700, 0.05243302
    %v1702 = vmul.f32 %v1695, %v1701
    %v1703 = vadd.f32 %v1702, 0.18741608
    %v1704 = vmul.f32 %v1695, %v1703
    %v1705 = vadd.f32 %v1704, 1.1283791
    %v1706 = vmul.f32 %v1692, %v1705
    %v1707 = vmul.f32 %v1695, 3.8918573e-05
    %v1708 = vadd.f32 %v1707, 0.001143296
    %v1709 = vmul.f32 %v1695, %v1708
    %v1710 = vadd.f32 %v1709, 0.014752088
    %v1711 = vmul.f32 %v1695, %v1710
    %v1712 = vadd.f32 %v1711, 0.112945676
    %v1713 = vmul.f32 %v1695, %v1712
    %v1714 = vadd.f32 %v1713, 0.4994258
    %v1715 = vmul.f32 %v1695, %v1714
    %v1716 = vadd.f32 %v1715, 1.0
    %v1717 = vrcp.pop %v1716
    %v1718 = vmul.f32 %v1716, %v1717
    %v1719 = vsub.f32 1.0, %v1718
    %v1720 = vmul.f32 %v1717, %v1719
    %v1721 = vadd.f32 %v1717, %v1720
    %vm1722 = vweird.f32 %v1716
    %vm1723 = vweird.f32 %v1717
    %vm1724 = vmor %vm1722, %vm1723
    %v1725 = vsel %vm1724, %v1717, %v1721
    %v1726 = vand.u32 2147483647, %v1716
    %vm1727 = vcmp.eq.f32.partialorder %v1726, 8.507059e+37
    %v1728 = vand.u32 %v1716, 2147483648
    %v1729 = vor.u32 1.1754944e-38, %v1728
    %v1730 = vsel %vm1727, %v1729, %v1725
    %v1731 = vmul.f32 %v1706, %v1730
    %v1732 = vmin.f32 %v1731, 1.0
    %v1733 = vmax.f32 %v1732, -1.0
    %v1734 = vmul.f32 %v1693, %v1693
    %v1735 = vmin.f32 16.0, %v1734
    %v1736 = vmul.f32 %v1735, 2.1237322e-06
    %v1737 = vadd.f32 %v1736, 0.00028619796
    %v1738 = vmul.f32 %v1735, %v1737
    %v1739 = vadd.f32 %v1738, 0.0036580483
    %v1740 = vmul.f32 %v1735, %v1739
    %v1741 = vadd.f32 %v1740, 0.05243302
    %v1742 = vmul.f32 %v1735, %v1741
    %v1743 = vadd.f32 %v1742, 0.18741608
    %v1744 = vmul.f32 %v1735, %v1743
    %v1745 = vadd.f32 %v1744, 1.1283791
    %v1746 = vmul.f32 %v1693, %v1745
    %v1747 = vmul.f32 %v1735, 3.8918573e-05
    %v1748 = vadd.f32 %v1747, 0.001143296
    %v1749 = vmul.f32 %v1735, %v1748
    %v1750 = vadd.f32 %v1749, 0.014752088
    %v1751 = vmul.f32 %v1735, %v1750
    %v1752 = vadd.f32 %v1751, 0.112945676
    %v1753 = vmul.f32 %v1735, %v1752
    %v1754 = vadd.f32 %v1753, 0.4994258
    %v1755 = vmul.f32 %v1735, %v1754
    %v1756 = vadd.f32 %v1755, 1.0
    %v1757 = vrcp.pop %v1756
    %v1758 = vmul.f32 %v1756, %v1757
    %v1759 = vsub.f32 1.0, %v1758
    %v1760 = vmul.f32 %v1757, %v1759
    %v1761 = vadd.f32 %v1757, %v1760
    %vm1762 = vweird.f32 %v1756
    %vm1763 = vweird.f32 %v1757
    %vm1764 = vmor %vm1762, %vm1763
    %v1765 = vsel %vm1764, %v1757, %v1761
    %v1766 = vand.u32 2147483647, %v1756
    %vm1767 = vcmp.eq.f32.partialorder %v1766, 8.507059e+37
    %v1768 = vand.u32 %v1756, 2147483648
    %v1769 = vor.u32 1.1754944e-38, %v1768
    %v1770 = vsel %vm1767, %v1769, %v1765
    %v1771 = vmul.f32 %v1746, %v1770
    %v1772 = vmin.f32 %v1771, 1.0
    %v1773 = vmax.f32 %v1772, -1.0
    %v1774 = vadd.f32 %v1733, 1.0
    %v1775 = vadd.f32 %v1773, 1.0
    %v1776 = vmul.f32 %v1690, %v1774
    %v1777 = vmul.f32 %v1691, %v1775
    %v1778 = vperm.slane %v82, 7
    %1779 = vmatpush.msra.mxu0 %v1001
    %1780 = vmatpush.msra.mxu0 %v1000
    %1781 = vmatpush.msra.mxu0 %v999
    %1782 = vmatpush.msra.mxu0 %v998
    %1783 = vmatpush.msra.mxu0 %v997
    %1784 = vmatpush.msra.mxu0 %v996
    %1785 = vmatpush.msra.mxu0 %v995
    %1786 = vmatpush.msra.mxu0 %v994
    %1787 = vmatpush.msra.mxu0 %v993
    %1788 = vmatpush.msra.mxu0 %v992
    %1789 = vmatpush.msra.mxu0 %v991
    %1790 = vmatpush.msra.mxu0 %v990
    %1791 = vmatpush.msra.mxu0 %v989
    %1792 = vmatpush.msra.mxu0 %v988
    %1793 = vmatpush.msra.mxu0 %v987
    %1794 = vmatpush.msra.mxu0 %v986
    %1795 = vmatmul.f32.gmra.mxu0 %v1776
    %v1796 = vpop.f32.mrf.mxu0
    %v1797 = vadd.f32 %v1778, %v1796
    %1798 = vmatmul.f32.gmra.mxu0 %v1777
    %v1799 = vpop.f32.mrf.mxu0
    %v1800 = vadd.f32 %v1778, %v1799
    %1801 = vdwg.mxu0
    %v1802 = vadd.f32 %v1649, %v1797
    %v1803 = vadd.f32 %v1652, %v1800
    %v1804 = vadd.f32 %v1802, %v970
    %v1805 = vadd.f32 %v1803, %v971
    %v1806 = vsel %vm124, %v1804, 0.0
    %1807 = vadd.xlane.f32.xlu0 %v1806
    %v1808 = vpop.xlane.xlu0 %1807
    %v1809 = vsel %vm124, %v1805, 0.0
    %1810 = vadd.xlane.f32.xlu0 %v1809
    %v1811 = vpop.xlane.xlu0 %1810
    %v1812 = vmul.f32 %v1808, %v137
    %v1813 = vmul.f32 %v1811, %v137
    %v1814 = vsub.f32 %v1804, %v1812
    %v1815 = vsub.f32 %v1805, %v1813
    %v1816 = vmul.f32 %v1814, %v1814
    %v1817 = vmul.f32 %v1815, %v1815
    %v1818 = vsel %vm124, %v1816, 0.0
    %1819 = vadd.xlane.f32.xlu0 %v1818
    %v1820 = vpop.xlane.xlu0 %1819
    %v1821 = vsel %vm124, %v1817, 0.0
    %1822 = vadd.xlane.f32.xlu0 %v1821
    %v1823 = vpop.xlane.xlu0 %1822
    %v1824 = vmul.f32 %v1820, %v137
    %v1825 = vmul.f32 %v1823, %v137
    %v1826 = vadd.f32 %v1824, 1e-05
    %v1827 = vadd.f32 %v1825, 1e-05
    %v1828 = vrsqrt.pop %v1826
    %v1829 = vmul.f32 %v1828, %v1826
    %v1830 = vmul.f32 %v1829, %v1828
    %v1831 = vmul.f32 0.5, %v1830
    %v1832 = vsub.f32 1.5, %v1831
    %v1833 = vmul.f32 %v1828, %v1832
    %vm1834 = vweird.f32 %v1826
    %vm1835 = vweird.f32 %v1828
    %vm1836 = vmor %vm1834, %vm1835
    %v1837 = vsel %vm1836, %v1828, %v1833
    %v1838 = vrsqrt.pop %v1827
    %v1839 = vmul.f32 %v1838, %v1827
    %v1840 = vmul.f32 %v1839, %v1838
    %v1841 = vmul.f32 0.5, %v1840
    %v1842 = vsub.f32 1.5, %v1841
    %v1843 = vmul.f32 %v1838, %v1842
    %vm1844 = vweird.f32 %v1827
    %vm1845 = vweird.f32 %v1838
    %vm1846 = vmor %vm1844, %vm1845
    %v1847 = vsel %vm1846, %v1838, %v1843
    %v1848 = vmul.f32 %v1814, %v1837
    %v1849 = vmul.f32 %v1815, %v1847
    %v1850 = vperm.slane %v83, 0
    %v1851 = vmul.f32 %v1848, %v1850
    %v1852 = vmul.f32 %v1849, %v1850
    %v1853 = vperm.slane %v83, 1
    %v1854 = vadd.f32 %v1851, %v1853
    %v1855 = vadd.f32 %v1852, %v1853
    %s1856 = scalar_lea.vmem %s3, 192
    %v1857 = vld [vmem:[%s1856] sm:$0xff]
    %v1858 = vld [vmem:[%s1856 + $0x8] sm:$0xff]
    %v1859 = vld [vmem:[%s1856 + $0x18] sm:$0xff]
    %v1860 = vld [vmem:[%s1856 + $0x20] sm:$0xff]
    %v1861 = vld [vmem:[%s1856 + $0x30] sm:$0xff]
    %v1862 = vld [vmem:[%s1856 + $0x38] sm:$0xff]
    %v1863 = vld [vmem:[%s1856 + $0x48] sm:$0xff]
    %v1864 = vld [vmem:[%s1856 + $0x50] sm:$0xff]
    %v1866 = vsel %vm124, %v1854, 0
    %v1869 = vsel %vm124, %v1855, 0
    %1871 = vmatpush.msra.mxu0 0.0
    %1872 = vmatpush.msra.mxu0 0.0
    %1873 = vmatpush.msra.mxu0 0.0
    %1874 = vmatpush.msra.mxu0 0.0
    %1875 = vmatpush.msra.mxu0 0.0
    %1876 = vmatpush.msra.mxu0 0.0
    %1877 = vmatpush.msra.mxu0 0.0
    %1878 = vmatpush.msra.mxu0 0.0
    %1879 = vmatpush.msra.mxu0 0.0
    %1880 = vmatpush.msra.mxu0 0.0
    %1881 = vmatpush.msra.mxu0 0.0
    %1882 = vmatpush.msra.mxu0 0.0
    %1883 = vmatpush.msra.mxu0 %v1863
    %1884 = vmatpush.msra.mxu0 %v1861
    %1885 = vmatpush.msra.mxu0 %v1859
    %1886 = vmatpush.msra.mxu0 %v1857
    %1887 = vmatmul.f32.gmra.mxu0 %v1866
    %v1888 = vpop.f32.mrf.mxu0
    %v1889 = vadd.f32 0.0, %v1888
    %1890 = vmatmul.f32.gmra.mxu0 %v1869
    %v1891 = vpop.f32.mrf.mxu0
    %v1892 = vadd.f32 0.0, %v1891
    %1893 = vdwg.mxu0
    %1894 = vmatpush.msra.mxu0 0.0
    %1895 = vmatpush.msra.mxu0 0.0
    %1896 = vmatpush.msra.mxu0 0.0
    %1897 = vmatpush.msra.mxu0 0.0
    %1898 = vmatpush.msra.mxu0 0.0
    %1899 = vmatpush.msra.mxu0 0.0
    %1900 = vmatpush.msra.mxu0 0.0
    %1901 = vmatpush.msra.mxu0 0.0
    %1902 = vmatpush.msra.mxu0 0.0
    %1903 = vmatpush.msra.mxu0 0.0
    %1904 = vmatpush.msra.mxu0 0.0
    %1905 = vmatpush.msra.mxu0 0.0
    %1906 = vmatpush.msra.mxu0 %v1864
    %1907 = vmatpush.msra.mxu0 %v1862
    %1908 = vmatpush.msra.mxu0 %v1860
    %1909 = vmatpush.msra.mxu0 %v1858
    %1910 = vmatmul.f32.gmra.mxu0 %v1866
    %v1911 = vpop.f32.mrf.mxu0
    %v1912 = vadd.f32 0.0, %v1911
    %1913 = vmatmul.f32.gmra.mxu0 %v1869
    %v1914 = vpop.f32.mrf.mxu0
    %v1915 = vadd.f32 0.0, %v1914
    %1916 = vdwg.mxu0
    %1917 = vst [vmem:[#allocation8] sm:$0xff] %v1889
    %1918 = vst [vmem:[#allocation8 + $0x8] sm:$0xff] %v1912
    %1919 = vst [vmem:[#allocation8 + $0x10] sm:$0xff] %v1892
    %1920 = vst [vmem:[#allocation8 + $0x18] sm:$0xff] %v1915
    // Predicated region
    $region38: #{tpu_custom_call.1} parent=1 // pred_check
      _
    $region39: #{tpu_custom_call.1} parent=1 // pred_check_branch
      %1922 = sbr.rel (0) target = $region41
    $region40: #{tpu_custom_call.1} parent=1 // pred_region
      %1924 = vsyncadd [#allocation4], 0
      %s1925 = sshll.u32 [#allocation8], 4
      %s1926 = int_to_ptr.vmem [resolvable:$true] %s1925
      %s1927 = sshll.u32 %s6, 4
      %s1928 = int_to_ptr.hbm [resolvable:$true] %s1927
      %1933 = dma.vmem_to_hbm [thread:$0]  %s1926, 512, %s1928, [#allocation4], 256, 256, 16
    $region41: #{tpu_custom_call.1} parent=1 // pred_fallthru
      _
    // Predicated region
    $region42: #{tpu_custom_call.1} parent=1 // pred_check
      _
    $region43: #{tpu_custom_call.1} parent=1 // pred_check_branch
      %1935 = sbr.rel (0) target = $region45
    $region44: #{tpu_custom_call.1} parent=1 // pred_region
      %1937 = dma.done [#allocation4], 512
    $region45: #{tpu_custom_call.1} parent=1 // pred_fallthru
      _
    %1938 = vsyncpa [#allocation3], 1
    %1939 = vsyncpa [#allocation6], 1
    %1940 = vsyncpa [#allocation4], 1

</llo_original>
